<compile_context>
chip_gen: v6e
topology: v6e:2x2x1
jax: 0.10.0
libtpu: 0.0.40
codegen_flags: <defaults>
</compile_context>

<pallas_src>
import functools

import jax
import jax.numpy as jnp
from jax.experimental import pallas as pl
from jax.experimental.pallas import tpu as pltpu


# ----------------------------------------------------------------------------
# Math helpers (shared by kernel and reference)
# ----------------------------------------------------------------------------
def _layernorm(x, gamma, beta, eps=1e-5):
    mu = jnp.mean(x, axis=-1, keepdims=True)
    var = jnp.mean((x - mu) ** 2, axis=-1, keepdims=True)
    return (x - mu) * jax.lax.rsqrt(var + eps) * gamma + beta


def _gelu_exact(x):
    # Matches torch.nn.GELU() default (erf formulation).
    return 0.5 * x * (1.0 + jax.lax.erf(x * jnp.float32(0.7071067811865476)))


def _vmem_limit_bytes():
    """Generation-aware VMEM limit (~3/4 of physical), with a safe fallback."""
    try:
        info = pltpu.get_tpu_info()
        cap = getattr(info, "vmem_capacity_bytes", None)
        if cap:
            return int(min(cap * 3 // 4, 112 * 1024 * 1024))
    except Exception:
        pass
    return 48 * 1024 * 1024  # fits v7x (64 MiB physical) and below


# ----------------------------------------------------------------------------
# Kernel 1: stem (pointwise conv + SiLU stand-in) fused with spatial mean-pool
# ----------------------------------------------------------------------------
def stem_pool_kernel(x_ref, ws_ref, bs_ref, out_ref, acc_ref, *, s_total):
    # TODO(synk): the pretrained EfficientNetV2-L conv stack is not reproducible
    # in-kernel; a pointwise conv + SiLU producing embedding_dim channels stands
    # in for backbone.features.
    si = pl.program_id(1)
    num_si = pl.num_programs(1)
    tile_s = x_ref.shape[-1]
    cin = x_ref.shape[1]

    @pl.when(si == 0)
    def _init():
        acc_ref[...] = jnp.zeros_like(acc_ref)

    x = x_ref[0]          # (Cin, TS) f32, S on lanes
    w = ws_ref[...]       # (D, Cin)  f32
    b = bs_ref[...]       # (D, 1)    f32

    # Pointwise conv as Cin broadcast-FMAs on the VPU (keeps S lane-dense and
    # avoids a K=Cin MXU matmul / implicit x transpose).
    feats = w[:, 0:1] * x[0:1, :]
    for c in range(1, cin):
        feats = feats + w[:, c:c + 1] * x[c:c + 1, :]
    feats = feats + b
    feats = feats * jax.nn.sigmoid(feats)          # SiLU, f32 (v5e-safe)

    if s_total % tile_s != 0:
        # Only the last tile has out-of-range lanes; gate the mask there so
        # full tiles pay no iota/compare/select cost.
        @pl.when(si != num_si - 1)
        def _acc_full():
            acc_ref[...] += feats

        @pl.when(si == num_si - 1)
        def _acc_masked():
            lane = jax.lax.broadcasted_iota(jnp.int32, (1, tile_s), 1)
            valid = (si * tile_s + lane) < s_total
            acc_ref[...] += jnp.where(valid, feats, 0.0)
    else:
        acc_ref[...] += feats

    @pl.when(si == num_si - 1)
    def _epilogue():
        # AdaptiveAvgPool2d((1,1)): collapse the lane (spatial) axis once.
        pooled = jnp.sum(acc_ref[...], axis=1, keepdims=True)   # (D, 1)
        out_ref[...] = (pooled * jnp.float32(1.0 / s_total))[None]   # (1, D, 1)


# ----------------------------------------------------------------------------
# Kernel 2: classifier head, tiled over tags
# ----------------------------------------------------------------------------
def head_kernel(pooled_ref, w1_ref, b1_ref, g1_ref, be1_ref,
                w2_ref, b2_ref, g2_ref, be2_ref,
                w3_ref, b3_ref, out_ref, h_ref):
    ti = pl.program_id(0)

    @pl.when(ti == 0)
    def _compute_hidden():
        p = pooled_ref[...]                                        # (B, D) f32
        h = jnp.dot(p.astype(jnp.bfloat16), w1_ref[...],
                    preferred_element_type=jnp.float32) + b1_ref[...]
        h = _gelu_exact(_layernorm(h, g1_ref[...], be1_ref[...]))
        # Dropout(p=0.1) is identity at inference.
        h = jnp.dot(h.astype(jnp.bfloat16), w2_ref[...],
                    preferred_element_type=jnp.float32) + b2_ref[...]
        h = _gelu_exact(_layernorm(h, g2_ref[...], be2_ref[...]))
        h_ref[...] = h

    # w3/b3 already carry the 1/temperature scale (folded in the wrapper).
    logits = jnp.dot(h_ref[...].astype(jnp.bfloat16), w3_ref[...],
                     preferred_element_type=jnp.float32) + b3_ref[...]
    out_ref[...] = jnp.clip(logits, -15.0, 15.0)


# ----------------------------------------------------------------------------
# Wrapper
# ----------------------------------------------------------------------------
def initial_only_tagger_forward(x_nchw, params, *, tile_s=1024, tile_t=2048,
                                single_buffer=True):
    """NCHW image -> (initial_preds, initial_preds), each (B, total_tags)."""
    B, Cin, H, W = x_nchw.shape
    S = H * W
    D = params['w_stem'].shape[1]
    total_tags = params['w3'].shape[1]

    # --- tile sizes (lane dims must be multiples of 128 or the full extent) --
    if tile_s >= S:
        tile_s = S
    else:
        tile_s = max(128, (tile_s // 128) * 128)

    tile_t = min(tile_t, ((total_tags + 127) // 128) * 128)
    tile_t = max(128, (tile_t // 128) * 128)
    t_pad = ((total_tags + tile_t - 1) // tile_t) * tile_t

    vmem_limit = _vmem_limit_bytes()

    # --- parameter prep ------------------------------------------------------
    # Stem weights stay f32 (FMAs run on the VPU; v5e has no bf16 VPU).
    w_stem_t = params['w_stem'].T                     # (D, Cin)
    b_stem_col = params['b_stem'].reshape(D, 1)       # (D, 1)

    # Head weights in bf16 (halves HBM DMA + VMEM residency); biases/LN f32.
    w1 = params['w1'].astype(jnp.bfloat16)
    w2 = params['w2'].astype(jnp.bfloat16)
    inv_t = 1.0 / params['temperature'][0]            # fold 1/T into w3, b3
    w3 = (params['w3'] * inv_t).astype(jnp.bfloat16)
    b3 = params['b3'] * inv_t
    if t_pad != total_tags:
        w3 = jnp.pad(w3, ((0, 0), (0, t_pad - total_tags)))
        b3 = jnp.pad(b3, ((0, 0), (0, t_pad - total_tags)))

    def _const(shape):
        # Whole array, constant block index -> DMA'd once, VMEM-resident.
        nd = len(shape)
        kwargs = {}
        if single_buffer:
            kwargs['pipeline_mode'] = pl.Buffered(1)   # no double-buffering
        return pl.BlockSpec(shape, lambda *idx, _n=nd: (0,) * _n, **kwargs)

    # --- kernel 1: stem + spatial mean pool ----------------------------------
    x_bcs = x_nchw.reshape(B, Cin, S)                  # f32, no extra HBM pass
    grid1 = (B, pl.cdiv(S, tile_s))

    pooled = pl.pallas_call(
        functools.partial(stem_pool_kernel, s_total=S),
        out_shape=jax.ShapeDtypeStruct((B, D, 1), jnp.float32),
        grid_spec=pltpu.PrefetchScalarGridSpec(
            num_scalar_prefetch=0,
            grid=grid1,
            in_specs=[
                pl.BlockSpec((1, Cin, tile_s), lambda b, si: (b, 0, si)),
                _const(w_stem_t.shape),
                _const(b_stem_col.shape),
            ],
            out_specs=pl.BlockSpec((1, D, 1), lambda b, si: (b, 0, 0)),
            scratch_shapes=[pltpu.VMEM((D, tile_s), jnp.float32)],
        ),
        compiler_params=pltpu.CompilerParams(
            dimension_semantics=("parallel", "arbitrary"),
            vmem_limit_bytes=vmem_limit,
        ),
    )(x_bcs, w_stem_t, b_stem_col)
    pooled = pooled.reshape(B, D)                      # free reshape

    # --- kernel 2: classifier head, tiled over tags --------------------------
    # NOTE: for B=1 on v7x the second TensorCore idles here; the head is tiny
    # relative to the stem so this is accepted rather than splitting tags.
    grid2 = (t_pad // tile_t,)

    preds = pl.pallas_call(
        head_kernel,
        out_shape=jax.ShapeDtypeStruct((B, t_pad), jnp.float32),
        grid_spec=pltpu.PrefetchScalarGridSpec(
            num_scalar_prefetch=0,
            grid=grid2,
            in_specs=[
                _const((B, D)),                                    # pooled
                _const(w1.shape), _const(params['b1'].shape),
                _const(params['g1'].shape), _const(params['be1'].shape),
                _const(w2.shape), _const(params['b2'].shape),
                _const(params['g2'].shape), _const(params['be2'].shape),
                pl.BlockSpec((D, tile_t), lambda ti: (0, ti)),     # w3 slab
                pl.BlockSpec((1, tile_t), lambda ti: (0, ti)),     # b3 slab
            ],
            out_specs=pl.BlockSpec((B, tile_t), lambda ti: (0, ti)),
            scratch_shapes=[pltpu.VMEM((B, D), jnp.float32)],      # hidden h
        ),
        compiler_params=pltpu.CompilerParams(
            dimension_semantics=("arbitrary",),
            vmem_limit_bytes=vmem_limit,
        ),
    )(pooled, w1, params['b1'], params['g1'], params['be1'],
      w2, params['b2'], params['g2'], params['be2'], w3, b3)

    preds = preds[:, :total_tags]
    return preds, preds


# ----------------------------------------------------------------------------
# Parameters & pure-JAX reference (mirrors kernel math incl. bf16 head weights)
# ----------------------------------------------------------------------------
def make_params(key, c_in, embedding_dim, total_tags):
    ks = jax.random.split(key, 8)
    scale = 0.05
    f32 = jnp.float32
    return {
        'w_stem': scale * jax.random.normal(ks[0], (c_in, embedding_dim), f32),
        'b_stem': jnp.zeros((1, embedding_dim), f32),
        'w1': scale * jax.random.normal(ks[1], (embedding_dim, 2 * embedding_dim), f32),
        'b1': 0.01 * jnp.ones((1, 2 * embedding_dim), f32),
        'g1': jnp.ones((1, 2 * embedding_dim), f32),
        'be1': jnp.zeros((1, 2 * embedding_dim), f32),
        'w2': scale * jax.random.normal(ks[2], (2 * embedding_dim, embedding_dim), f32),
        'b2': 0.01 * jnp.ones((1, embedding_dim), f32),
        'g2': jnp.ones((1, embedding_dim), f32),
        'be2': jnp.zeros((1, embedding_dim), f32),
        'w3': scale * jax.random.normal(ks[3], (embedding_dim, total_tags), f32),
        'b3': jnp.zeros((1, total_tags), f32),
        'temperature': jnp.array([1.5], f32),     # nn.Parameter(torch.ones(1)*1.5)
    }


def reference_forward(x_nchw, params):
    B, Cin, H, W = x_nchw.shape
    x = x_nchw.reshape(B, Cin, H * W).astype(jnp.float32)
    feats = jnp.einsum('bcs,cd->bsd', x, params['w_stem']) + params['b_stem']
    feats = feats * jax.nn.sigmoid(feats)
    pooled = jnp.mean(feats, axis=1)                              # (B, D)

    inv_t = 1.0 / params['temperature'][0]
    w1 = params['w1'].astype(jnp.bfloat16)
    w2 = params['w2'].astype(jnp.bfloat16)
    w3 = (params['w3'] * inv_t).astype(jnp.bfloat16)
    b3 = params['b3'] * inv_t

    h = jnp.dot(pooled.astype(jnp.bfloat16), w1,
                preferred_element_type=jnp.float32) + params['b1']
    h = _gelu_exact(_layernorm(h, params['g1'], params['be1']))
    h = jnp.dot(h.astype(jnp.bfloat16), w2,
                preferred_element_type=jnp.float32) + params['b2']
    h = _gelu_exact(_layernorm(h, params['g2'], params['be2']))
    logits = jnp.dot(h.astype(jnp.bfloat16), w3,
                     preferred_element_type=jnp.float32) + b3
    return jnp.clip(logits, -15.0, 15.0)


# ----------------------------------------------------------------------------
# Demo / correctness check
# ----------------------------------------------------------------------------
if __name__ == "__main__":
    B, C_IN, H, W = 2, 4, 16, 16
    EMBED = 32
    TOTAL_TAGS = 64

    key = jax.random.PRNGKey(0)
    kx, kx2, kp = jax.random.split(key, 3)
    x = jax.random.normal(kx, (B, C_IN, H, W), jnp.float32)
    params = make_params(kp, C_IN, EMBED, TOTAL_TAGS)

    def run(inp, single_buffer):
        fwd = jax.jit(functools.partial(initial_only_tagger_forward,
                                        tile_s=128, tile_t=128,
                                        single_buffer=single_buffer))
        a, b = fwd(inp, params)
        return jax.block_until_ready(a), b

    # tile_s=128 -> 2 spatial tiles per image: exercises the accumulator path.
    single_buffer = True
    try:
        initial_preds, refined_preds = run(x, single_buffer)
    except Exception:
        # pipeline_mode=pl.Buffered(1) not supported on this build; retry
        # with default (double-buffered) constant blocks.
        single_buffer = False
        initial_preds, refined_preds = run(x, single_buffer)

    ref = reference_forward(x, params)
    assert initial_preds.shape == (B, TOTAL_TAGS)
    assert jnp.allclose(initial_preds, ref, atol=2e-3, rtol=2e-3), "mismatch vs reference"
    assert jnp.allclose(initial_preds, refined_preds)

    # Partial last spatial tile path: S = 144 is not a multiple of tile_s=128.
    x2 = jax.random.normal(kx2, (1, C_IN, 12, 12), jnp.float32)
    p2, _ = run(x2, single_buffer)
    ref2 = reference_forward(x2, params)
    assert jnp.allclose(p2, ref2, atol=2e-3, rtol=2e-3), "mismatch on partial tile"

    print("KERNEL_OK")
</pallas_src>

<mosaic_0001>
module attributes {stable_mosaic.version = 11 : i64} {
  func.func @stem_pool_kernel(%arg0: i32, %arg1: i32, %arg2: memref<1x4x128xf32, #tpu.memory_space<vmem>>, %arg3: memref<32x4xf32, #tpu.memory_space<vmem>>, %arg4: memref<32x1xf32, #tpu.memory_space<vmem>>, %arg5: memref<1x32x1xf32, #tpu.memory_space<vmem>>, %arg6: memref<32x128xf32, #tpu.memory_space<vmem>>) attributes {dimension_semantics = [#tpu.dimension_semantics<parallel>, #tpu.dimension_semantics<arbitrary>], iteration_bounds = array<i64: 2, 2>, scalar_prefetch = 0 : i64, scratch_operands = 1 : i64, tpu.core_type = #tpu.core_type<tc>, window_params = [{transform_indices = @transform_0, window_bounds = array<i64: 1, 4, 128>}, {pipeline_mode = #tpu.pipeline_mode<synchronous>, transform_indices = @transform_1, window_bounds = array<i64: 32, 4>}, {pipeline_mode = #tpu.pipeline_mode<synchronous>, transform_indices = @transform_2, window_bounds = array<i64: 32, 1>}, {transform_indices = @transform_3, window_bounds = array<i64: 1, 32, 1>}]} {
    %c0_i32 = arith.constant 0 : i32
    %0 = arith.cmpi eq, %arg1, %c0_i32 : i32
    %1 = arith.extui %0 : i1 to i32
    %c0_i32_0 = arith.constant 0 : i32
    %2 = arith.cmpi ne, %1, %c0_i32_0 : i32
    scf.if %2 {
      %cst_12 = arith.constant 0.000000e+00 : f32
      %44 = vector.broadcast %cst_12 : f32 to vector<32x128xf32>
      %c0_13 = arith.constant 0 : index
      %c0_14 = arith.constant 0 : index
      %45 = vector.load %arg6[%c0_13, %c0_14] : memref<32x128xf32, #tpu.memory_space<vmem>>, vector<32x128xf32>
      tpu.vector_store %arg6[%c0_13, %c0_14], %44 {strides = array<i32>} : memref<32x128xf32, #tpu.memory_space<vmem>>, vector<32x128xf32>,
    } else {
    }
    %c0 = arith.constant 0 : index
    %c0_1 = arith.constant 0 : index
    %c0_2 = arith.constant 0 : index
    %3 = vector.load %arg2[%c0, %c0_1, %c0_2] : memref<1x4x128xf32, #tpu.memory_space<vmem>>, vector<1x4x128xf32>
    %4 = vector.shape_cast %3 : vector<1x4x128xf32> to vector<4x128xf32>
    %c0_3 = arith.constant 0 : index
    %c0_4 = arith.constant 0 : index
    %5 = vector.load %arg3[%c0_3, %c0_4] : memref<32x4xf32, #tpu.memory_space<vmem>>, vector<32x4xf32>
    %c0_5 = arith.constant 0 : index
    %c0_6 = arith.constant 0 : index
    %6 = vector.load %arg4[%c0_5, %c0_6] : memref<32x1xf32, #tpu.memory_space<vmem>>, vector<32x1xf32>
    %7 = vector.extract_strided_slice %5 {offsets = [0, 0], sizes = [32, 1], strides = [1, 1]} : vector<32x4xf32> to vector<32x1xf32>
    %8 = vector.extract_strided_slice %4 {offsets = [0, 0], sizes = [1, 128], strides = [1, 1]} : vector<4x128xf32> to vector<1x128xf32>
    %9 = vector.broadcast %7 : vector<32x1xf32> to vector<32x128xf32>
    %10 = vector.broadcast %8 : vector<1x128xf32> to vector<32x128xf32>
    %11 = arith.mulf %9, %10 : vector<32x128xf32>
    %12 = vector.extract_strided_slice %5 {offsets = [0, 1], sizes = [32, 1], strides = [1, 1]} : vector<32x4xf32> to vector<32x1xf32>
    %13 = vector.extract_strided_slice %4 {offsets = [1, 0], sizes = [1, 128], strides = [1, 1]} : vector<4x128xf32> to vector<1x128xf32>
    %14 = vector.broadcast %12 : vector<32x1xf32> to vector<32x128xf32>
    %15 = vector.broadcast %13 : vector<1x128xf32> to vector<32x128xf32>
    %16 = arith.mulf %14, %15 : vector<32x128xf32>
    %17 = arith.addf %11, %16 : vector<32x128xf32>
    %18 = vector.extract_strided_slice %5 {offsets = [0, 2], sizes = [32, 1], strides = [1, 1]} : vector<32x4xf32> to vector<32x1xf32>
    %19 = vector.extract_strided_slice %4 {offsets = [2, 0], sizes = [1, 128], strides = [1, 1]} : vector<4x128xf32> to vector<1x128xf32>
    %20 = vector.broadcast %18 : vector<32x1xf32> to vector<32x128xf32>
    %21 = vector.broadcast %19 : vector<1x128xf32> to vector<32x128xf32>
    %22 = arith.mulf %20, %21 : vector<32x128xf32>
    %23 = arith.addf %17, %22 : vector<32x128xf32>
    %24 = vector.extract_strided_slice %5 {offsets = [0, 3], sizes = [32, 1], strides = [1, 1]} : vector<32x4xf32> to vector<32x1xf32>
    %25 = vector.extract_strided_slice %4 {offsets = [3, 0], sizes = [1, 128], strides = [1, 1]} : vector<4x128xf32> to vector<1x128xf32>
    %26 = vector.broadcast %24 : vector<32x1xf32> to vector<32x128xf32>
    %27 = vector.broadcast %25 : vector<1x128xf32> to vector<32x128xf32>
    %28 = arith.mulf %26, %27 : vector<32x128xf32>
    %29 = arith.addf %23, %28 : vector<32x128xf32>
    %30 = vector.broadcast %6 : vector<32x1xf32> to vector<32x128xf32>
    %31 = arith.addf %29, %30 : vector<32x128xf32>
    %32 = arith.negf %31 : vector<32x128xf32>
    %33 = math.exp %32 : vector<32x128xf32>
    %cst = arith.constant 1.000000e+00 : f32
    %34 = vector.broadcast %cst : f32 to vector<32x128xf32>
    %35 = arith.addf %34, %33 : vector<32x128xf32>
    %36 = arith.divf %34, %35 : vector<32x128xf32>
    %37 = arith.mulf %31, %36 : vector<32x128xf32>
    %c0_7 = arith.constant 0 : index
    %c0_8 = arith.constant 0 : index
    %38 = vector.load %arg6[%c0_7, %c0_8] : memref<32x128xf32, #tpu.memory_space<vmem>>, vector<32x128xf32>
    %39 = arith.addf %38, %37 : vector<32x128xf32>
    %c0_9 = arith.constant 0 : index
    %c0_10 = arith.constant 0 : index
    %40 = vector.load %arg6[%c0_9, %c0_10] : memref<32x128xf32, #tpu.memory_space<vmem>>, vector<32x128xf32>
    tpu.vector_store %arg6[%c0_9, %c0_10], %39 {strides = array<i32>} : memref<32x128xf32, #tpu.memory_space<vmem>>, vector<32x128xf32>,
    %c1_i32 = arith.constant 1 : i32
    %41 = arith.cmpi eq, %arg1, %c1_i32 : i32
    %42 = arith.extui %41 : i1 to i32
    %c0_i32_11 = arith.constant 0 : i32
    %43 = arith.cmpi ne, %42, %c0_i32_11 : i32
    scf.if %43 {
      %c0_12 = arith.constant 0 : index
      %c0_13 = arith.constant 0 : index
      %44 = vector.load %arg6[%c0_12, %c0_13] : memref<32x128xf32, #tpu.memory_space<vmem>>, vector<32x128xf32>
      %cst_14 = arith.constant dense<0.000000e+00> : vector<32xf32>
      %45 = vector.multi_reduction <add>, %44, %cst_14 [1] : vector<32x128xf32> to vector<32xf32>
      %46 = vector.shape_cast %45 : vector<32xf32> to vector<32x1xf32>
      %cst_15 = arith.constant 3.906250e-03 : f32
      %47 = vector.broadcast %cst_15 : f32 to vector<32x1xf32>
      %48 = arith.mulf %46, %47 : vector<32x1xf32>
      %49 = vector.shape_cast %48 : vector<32x1xf32> to vector<1x32x1xf32>
      %c0_16 = arith.constant 0 : index
      %c0_17 = arith.constant 0 : index
      %c0_18 = arith.constant 0 : index
      %50 = vector.load %arg5[%c0_16, %c0_17, %c0_18] : memref<1x32x1xf32, #tpu.memory_space<vmem>>, vector<1x32x1xf32>
      tpu.vector_store %arg5[%c0_16, %c0_17, %c0_18], %49 {strides = array<i32>} : memref<1x32x1xf32, #tpu.memory_space<vmem>>, vector<1x32x1xf32>,
    } else {
    }
    return
  }
  func.func @transform_0(%arg0: i32, %arg1: i32) -> (i32, i32, i32) {
    %c0_i32 = arith.constant 0 : i32
    %c0_i32_0 = arith.constant 0 : i32
    return %arg0, %c0_i32, %arg1 : i32, i32, i32
  }
  func.func @transform_1(%arg0: i32, %arg1: i32) -> (i32, i32) {
    %c0_i32 = arith.constant 0 : i32
    %c0_i32_0 = arith.constant 0 : i32
    %c0_i32_1 = arith.constant 0 : i32
    return %c0_i32, %c0_i32_0 : i32, i32
  }
  func.func @transform_2(%arg0: i32, %arg1: i32) -> (i32, i32) {
    %c0_i32 = arith.constant 0 : i32
    %c0_i32_0 = arith.constant 0 : i32
    %c0_i32_1 = arith.constant 0 : i32
    return %c0_i32, %c0_i32_0 : i32, i32
  }
  func.func @transform_3(%arg0: i32, %arg1: i32) -> (i32, i32, i32) {
    %c0_i32 = arith.constant 0 : i32
    %c0_i32_0 = arith.constant 0 : i32
    %c0_i32_1 = arith.constant 0 : i32
    return %arg0, %c0_i32, %c0_i32_0 : i32, i32, i32
  }
}

module attributes {stable_mosaic.version = 11 : i64} {
  func.func @head_kernel(%arg0: i32, %arg1: memref<2x32xf32, #tpu.memory_space<vmem>>, %arg2: memref<32x64xbf16, #tpu.memory_space<vmem>>, %arg3: memref<1x64xf32, #tpu.memory_space<vmem>>, %arg4: memref<1x64xf32, #tpu.memory_space<vmem>>, %arg5: memref<1x64xf32, #tpu.memory_space<vmem>>, %arg6: memref<64x32xbf16, #tpu.memory_space<vmem>>, %arg7: memref<1x32xf32, #tpu.memory_space<vmem>>, %arg8: memref<1x32xf32, #tpu.memory_space<vmem>>, %arg9: memref<1x32xf32, #tpu.memory_space<vmem>>, %arg10: memref<32x128xbf16, #tpu.memory_space<vmem>>, %arg11: memref<1x128xf32, #tpu.memory_space<vmem>>, %arg12: memref<2x128xf32, #tpu.memory_space<vmem>>, %arg13: memref<2x32xf32, #tpu.memory_space<vmem>>) attributes {dimension_semantics = [#tpu.dimension_semantics<arbitrary>], iteration_bounds = array<i64: 1>, scalar_prefetch = 0 : i64, scratch_operands = 1 : i64, tpu.core_type = #tpu.core_type<tc>, window_params = [{pipeline_mode = #tpu.pipeline_mode<synchronous>, transform_indices = @transform_0, window_bounds = array<i64: 2, 32>}, {pipeline_mode = #tpu.pipeline_mode<synchronous>, transform_indices = @transform_1, window_bounds = array<i64: 32, 64>}, {pipeline_mode = #tpu.pipeline_mode<synchronous>, transform_indices = @transform_2, window_bounds = array<i64: 1, 64>}, {pipeline_mode = #tpu.pipeline_mode<synchronous>, transform_indices = @transform_3, window_bounds = array<i64: 1, 64>}, {pipeline_mode = #tpu.pipeline_mode<synchronous>, transform_indices = @transform_4, window_bounds = array<i64: 1, 64>}, {pipeline_mode = #tpu.pipeline_mode<synchronous>, transform_indices = @transform_5, window_bounds = array<i64: 64, 32>}, {pipeline_mode = #tpu.pipeline_mode<synchronous>, transform_indices = @transform_6, window_bounds = array<i64: 1, 32>}, {pipeline_mode = #tpu.pipeline_mode<synchronous>, transform_indices = @transform_7, window_bounds = array<i64: 1, 32>}, {pipeline_mode = #tpu.pipeline_mode<synchronous>, transform_indices = @transform_8, window_bounds = array<i64: 1, 32>}, {transform_indices = @transform_9, window_bounds = array<i64: 32, 128>}, {transform_indices = @transform_10, window_bounds = array<i64: 1, 128>}, {transform_indices = @transform_11, window_bounds = array<i64: 2, 128>}]} {
    %c0_i32 = arith.constant 0 : i32
    %0 = arith.cmpi eq, %arg0, %c0_i32 : i32
    %1 = arith.extui %0 : i1 to i32
    %c0_i32_0 = arith.constant 0 : i32
    %2 = arith.cmpi ne, %1, %c0_i32_0 : i32
    scf.if %2 {
      %c0_10 = arith.constant 0 : index
      %c0_11 = arith.constant 0 : index
      %15 = vector.load %arg1[%c0_10, %c0_11] : memref<2x32xf32, #tpu.memory_space<vmem>>, vector<2x32xf32>
      %16 = arith.truncf %15 : vector<2x32xf32> to vector<2x32xbf16>
      %c0_12 = arith.constant 0 : index
      %c0_13 = arith.constant 0 : index
      %17 = vector.load %arg2[%c0_12, %c0_13] : memref<32x64xbf16, #tpu.memory_space<vmem>>, vector<32x64xbf16>
      %cst_14 = arith.constant dense<0.000000e+00> : vector<2x64xf32>
      %18 = tpu.matmul %16, %17, %cst_14 {dimension_numbers = #tpu.dot_dimension_numbers<[1], [0], [0], [1], [0, 0, 1, 1], [], []>} : vector<2x32xbf16>, vector<32x64xbf16>, vector<2x64xf32> -> vector<2x64xf32>
      %c0_15 = arith.constant 0 : index
      %c0_16 = arith.constant 0 : index
      %19 = vector.load %arg3[%c0_15, %c0_16] : memref<1x64xf32, #tpu.memory_space<vmem>>, vector<1x64xf32>
      %20 = vector.broadcast %19 : vector<1x64xf32> to vector<2x64xf32>
      %21 = arith.addf %18, %20 : vector<2x64xf32>
      %c0_17 = arith.constant 0 : index
      %c0_18 = arith.constant 0 : index
      %22 = vector.load %arg4[%c0_17, %c0_18] : memref<1x64xf32, #tpu.memory_space<vmem>>, vector<1x64xf32>
      %c0_19 = arith.constant 0 : index
      %c0_20 = arith.constant 0 : index
      %23 = vector.load %arg5[%c0_19, %c0_20] : memref<1x64xf32, #tpu.memory_space<vmem>>, vector<1x64xf32>
      %cst_21 = arith.constant dense<0.000000e+00> : vector<2xf32>
      %24 = vector.multi_reduction <add>, %21, %cst_21 [1] : vector<2x64xf32> to vector<2xf32>
      %25 = vector.shape_cast %24 : vector<2xf32> to vector<2x1xf32>
      %cst_22 = arith.constant 6.400000e+01 : f32
      %26 = vector.broadcast %cst_22 : f32 to vector<2x1xf32>
      %27 = arith.divf %25, %26 : vector<2x1xf32>
      %28 = vector.broadcast %27 : vector<2x1xf32> to vector<2x64xf32>
      %29 = arith.subf %21, %28 : vector<2x64xf32>
      %30 = arith.mulf %29, %29 : vector<2x64xf32>
      %cst_23 = arith.constant dense<0.000000e+00> : vector<2xf32>
      %31 = vector.multi_reduction <add>, %30, %cst_23 [1] : vector<2x64xf32> to vector<2xf32>
      %32 = vector.shape_cast %31 : vector<2xf32> to vector<2x1xf32>
      %cst_24 = arith.constant 6.400000e+01 : f32
      %33 = vector.broadcast %cst_24 : f32 to vector<2x1xf32>
      %34 = arith.divf %32, %33 : vector<2x1xf32>
      %35 = vector.broadcast %27 : vector<2x1xf32> to vector<2x64xf32>
      %36 = arith.subf %21, %35 : vector<2x64xf32>
      %cst_25 = arith.constant 9.99999974E-6 : f32
      %37 = vector.broadcast %cst_25 : f32 to vector<2x1xf32>
      %38 = arith.addf %34, %37 : vector<2x1xf32>
      %39 = math.rsqrt %38 : vector<2x1xf32>
      %40 = vector.broadcast %39 : vector<2x1xf32> to vector<2x64xf32>
      %41 = arith.mulf %36, %40 : vector<2x64xf32>
      %42 = vector.broadcast %22 : vector<1x64xf32> to vector<2x64xf32>
      %43 = arith.mulf %41, %42 : vector<2x64xf32>
      %44 = vector.broadcast %23 : vector<1x64xf32> to vector<2x64xf32>
      %45 = arith.addf %43, %44 : vector<2x64xf32>
      %cst_26 = arith.constant 5.000000e-01 : f32
      %46 = vector.broadcast %cst_26 : f32 to vector<2x64xf32>
      %47 = arith.mulf %46, %45 : vector<2x64xf32>
      %cst_27 = arith.constant 0.707106769 : f32
      %48 = vector.broadcast %cst_27 : f32 to vector<2x64xf32>
      %49 = arith.mulf %45, %48 : vector<2x64xf32>
      %50 = math.erf %49 : vector<2x64xf32>
      %cst_28 = arith.constant 1.000000e+00 : f32
      %51 = vector.broadcast %cst_28 : f32 to vector<2x64xf32>
      %52 = arith.addf %51, %50 : vector<2x64xf32>
      %53 = arith.mulf %47, %52 : vector<2x64xf32>
      %54 = arith.truncf %53 : vector<2x64xf32> to vector<2x64xbf16>
      %c0_29 = arith.constant 0 : index
      %c0_30 = arith.constant 0 : index
      %55 = vector.load %arg6[%c0_29, %c0_30] : memref<64x32xbf16, #tpu.memory_space<vmem>>, vector<64x32xbf16>
      %cst_31 = arith.constant dense<0.000000e+00> : vector<2x32xf32>
      %56 = tpu.matmul %54, %55, %cst_31 {dimension_numbers = #tpu.dot_dimension_numbers<[1], [0], [0], [1], [0, 0, 1, 1], [], []>} : vector<2x64xbf16>, vector<64x32xbf16>, vector<2x32xf32> -> vector<2x32xf32>
      %c0_32 = arith.constant 0 : index
      %c0_33 = arith.constant 0 : index
      %57 = vector.load %arg7[%c0_32, %c0_33] : memref<1x32xf32, #tpu.memory_space<vmem>>, vector<1x32xf32>
      %58 = vector.broadcast %57 : vector<1x32xf32> to vector<2x32xf32>
      %59 = arith.addf %56, %58 : vector<2x32xf32>
      %c0_34 = arith.constant 0 : index
      %c0_35 = arith.constant 0 : index
      %60 = vector.load %arg8[%c0_34, %c0_35] : memref<1x32xf32, #tpu.memory_space<vmem>>, vector<1x32xf32>
      %c0_36 = arith.constant 0 : index
      %c0_37 = arith.constant 0 : index
      %61 = vector.load %arg9[%c0_36, %c0_37] : memref<1x32xf32, #tpu.memory_space<vmem>>, vector<1x32xf32>
      %cst_38 = arith.constant dense<0.000000e+00> : vector<2xf32>
      %62 = vector.multi_reduction <add>, %59, %cst_38 [1] : vector<2x32xf32> to vector<2xf32>
      %63 = vector.shape_cast %62 : vector<2xf32> to vector<2x1xf32>
      %cst_39 = arith.constant 3.200000e+01 : f32
      %64 = vector.broadcast %cst_39 : f32 to vector<2x1xf32>
      %65 = arith.divf %63, %64 : vector<2x1xf32>
      %66 = vector.broadcast %65 : vector<2x1xf32> to vector<2x32xf32>
      %67 = arith.subf %59, %66 : vector<2x32xf32>
      %68 = arith.mulf %67, %67 : vector<2x32xf32>
      %cst_40 = arith.constant dense<0.000000e+00> : vector<2xf32>
      %69 = vector.multi_reduction <add>, %68, %cst_40 [1] : vector<2x32xf32> to vector<2xf32>
      %70 = vector.shape_cast %69 : vector<2xf32> to vector<2x1xf32>
      %cst_41 = arith.constant 3.200000e+01 : f32
      %71 = vector.broadcast %cst_41 : f32 to vector<2x1xf32>
      %72 = arith.divf %70, %71 : vector<2x1xf32>
      %73 = vector.broadcast %65 : vector<2x1xf32> to vector<2x32xf32>
      %74 = arith.subf %59, %73 : vector<2x32xf32>
      %cst_42 = arith.constant 9.99999974E-6 : f32
      %75 = vector.broadcast %cst_42 : f32 to vector<2x1xf32>
      %76 = arith.addf %72, %75 : vector<2x1xf32>
      %77 = math.rsqrt %76 : vector<2x1xf32>
      %78 = vector.broadcast %77 : vector<2x1xf32> to vector<2x32xf32>
      %79 = arith.mulf %74, %78 : vector<2x32xf32>
      %80 = vector.broadcast %60 : vector<1x32xf32> to vector<2x32xf32>
      %81 = arith.mulf %79, %80 : vector<2x32xf32>
      %82 = vector.broadcast %61 : vector<1x32xf32> to vector<2x32xf32>
      %83 = arith.addf %81, %82 : vector<2x32xf32>
      %cst_43 = arith.constant 5.000000e-01 : f32
      %84 = vector.broadcast %cst_43 : f32 to vector<2x32xf32>
      %85 = arith.mulf %84, %83 : vector<2x32xf32>
      %cst_44 = arith.constant 0.707106769 : f32
      %86 = vector.broadcast %cst_44 : f32 to vector<2x32xf32>
      %87 = arith.mulf %83, %86 : vector<2x32xf32>
      %88 = math.erf %87 : vector<2x32xf32>
      %cst_45 = arith.constant 1.000000e+00 : f32
      %89 = vector.broadcast %cst_45 : f32 to vector<2x32xf32>
      %90 = arith.addf %89, %88 : vector<2x32xf32>
      %91 = arith.mulf %85, %90 : vector<2x32xf32>
      %c0_46 = arith.constant 0 : index
      %c0_47 = arith.constant 0 : index
      %92 = vector.load %arg13[%c0_46, %c0_47] : memref<2x32xf32, #tpu.memory_space<vmem>>, vector<2x32xf32>
      tpu.vector_store %arg13[%c0_46, %c0_47], %91 {strides = array<i32>} : memref<2x32xf32, #tpu.memory_space<vmem>>, vector<2x32xf32>,
    } else {
    }
    %c0 = arith.constant 0 : index
    %c0_1 = arith.constant 0 : index
    %3 = vector.load %arg13[%c0, %c0_1] : memref<2x32xf32, #tpu.memory_space<vmem>>, vector<2x32xf32>
    %4 = arith.truncf %3 : vector<2x32xf32> to vector<2x32xbf16>
    %c0_2 = arith.constant 0 : index
    %c0_3 = arith.constant 0 : index
    %5 = vector.load %arg10[%c0_2, %c0_3] : memref<32x128xbf16, #tpu.memory_space<vmem>>, vector<32x128xbf16>
    %cst = arith.constant dense<0.000000e+00> : vector<2x128xf32>
    %6 = tpu.matmul %4, %5, %cst {dimension_numbers = #tpu.dot_dimension_numbers<[1], [0], [0], [1], [0, 0, 1, 1], [], []>} : vector<2x32xbf16>, vector<32x128xbf16>, vector<2x128xf32> -> vector<2x128xf32>
    %c0_4 = arith.constant 0 : index
    %c0_5 = arith.constant 0 : index
    %7 = vector.load %arg11[%c0_4, %c0_5] : memref<1x128xf32, #tpu.memory_space<vmem>>, vector<1x128xf32>
    %8 = vector.broadcast %7 : vector<1x128xf32> to vector<2x128xf32>
    %9 = arith.addf %6, %8 : vector<2x128xf32>
    %cst_6 = arith.constant -1.500000e+01 : f32
    %cst_7 = arith.constant 1.500000e+01 : f32
    %10 = vector.broadcast %cst_6 : f32 to vector<2x128xf32>
    %11 = arith.maximumf %10, %9 : vector<2x128xf32>
    %12 = vector.broadcast %cst_7 : f32 to vector<2x128xf32>
    %13 = arith.minimumf %12, %11 : vector<2x128xf32>
    %c0_8 = arith.constant 0 : index
    %c0_9 = arith.constant 0 : index
    %14 = vector.load %arg12[%c0_8, %c0_9] : memref<2x128xf32, #tpu.memory_space<vmem>>, vector<2x128xf32>
    tpu.vector_store %arg12[%c0_8, %c0_9], %13 {strides = array<i32>} : memref<2x128xf32, #tpu.memory_space<vmem>>, vector<2x128xf32>,
    return
  }
  func.func @transform_0(%arg0: i32) -> (i32, i32) {
    %c0_i32 = arith.constant 0 : i32
    %c0_i32_0 = arith.constant 0 : i32
    %c0_i32_1 = arith.constant 0 : i32
    return %c0_i32, %c0_i32_0 : i32, i32
  }
  func.func @transform_1(%arg0: i32) -> (i32, i32) {
    %c0_i32 = arith.constant 0 : i32
    %c0_i32_0 = arith.constant 0 : i32
    %c0_i32_1 = arith.constant 0 : i32
    return %c0_i32, %c0_i32_0 : i32, i32
  }
  func.func @transform_2(%arg0: i32) -> (i32, i32) {
    %c0_i32 = arith.constant 0 : i32
    %c0_i32_0 = arith.constant 0 : i32
    %c0_i32_1 = arith.constant 0 : i32
    return %c0_i32, %c0_i32_0 : i32, i32
  }
  func.func @transform_3(%arg0: i32) -> (i32, i32) {
    %c0_i32 = arith.constant 0 : i32
    %c0_i32_0 = arith.constant 0 : i32
    %c0_i32_1 = arith.constant 0 : i32
    return %c0_i32, %c0_i32_0 : i32, i32
  }
  func.func @transform_4(%arg0: i32) -> (i32, i32) {
    %c0_i32 = arith.constant 0 : i32
    %c0_i32_0 = arith.constant 0 : i32
    %c0_i32_1 = arith.constant 0 : i32
    return %c0_i32, %c0_i32_0 : i32, i32
  }
  func.func @transform_5(%arg0: i32) -> (i32, i32) {
    %c0_i32 = arith.constant 0 : i32
    %c0_i32_0 = arith.constant 0 : i32
    %c0_i32_1 = arith.constant 0 : i32
    return %c0_i32, %c0_i32_0 : i32, i32
  }
  func.func @transform_6(%arg0: i32) -> (i32, i32) {
    %c0_i32 = arith.constant 0 : i32
    %c0_i32_0 = arith.constant 0 : i32
    %c0_i32_1 = arith.constant 0 : i32
    return %c0_i32, %c0_i32_0 : i32, i32
  }
  func.func @transform_7(%arg0: i32) -> (i32, i32) {
    %c0_i32 = arith.constant 0 : i32
    %c0_i32_0 = arith.constant 0 : i32
    %c0_i32_1 = arith.constant 0 : i32
    return %c0_i32, %c0_i32_0 : i32, i32
  }
  func.func @transform_8(%arg0: i32) -> (i32, i32) {
    %c0_i32 = arith.constant 0 : i32
    %c0_i32_0 = arith.constant 0 : i32
    %c0_i32_1 = arith.constant 0 : i32
    return %c0_i32, %c0_i32_0 : i32, i32
  }
  func.func @transform_9(%arg0: i32) -> (i32, i32) {
    %c0_i32 = arith.constant 0 : i32
    %c0_i32_0 = arith.constant 0 : i32
    return %c0_i32, %arg0 : i32, i32
  }
  func.func @transform_10(%arg0: i32) -> (i32, i32) {
    %c0_i32 = arith.constant 0 : i32
    %c0_i32_0 = arith.constant 0 : i32
    return %c0_i32, %arg0 : i32, i32
  }
  func.func @transform_11(%arg0: i32) -> (i32, i32) {
    %c0_i32 = arith.constant 0 : i32
    %c0_i32_0 = arith.constant 0 : i32
    return %c0_i32, %arg0 : i32, i32
  }
}

module attributes {stable_mosaic.version = 11 : i64} {
  func.func @head_kernel(%arg0: i32, %arg1: memref<2x32xf32, #tpu.memory_space<vmem>>, %arg2: memref<32x64xbf16, #tpu.memory_space<vmem>>, %arg3: memref<1x64xf32, #tpu.memory_space<vmem>>, %arg4: memref<1x64xf32, #tpu.memory_space<vmem>>, %arg5: memref<1x64xf32, #tpu.memory_space<vmem>>, %arg6: memref<64x32xbf16, #tpu.memory_space<vmem>>, %arg7: memref<1x32xf32, #tpu.memory_space<vmem>>, %arg8: memref<1x32xf32, #tpu.memory_space<vmem>>, %arg9: memref<1x32xf32, #tpu.memory_space<vmem>>, %arg10: memref<32x128xbf16, #tpu.memory_space<vmem>>, %arg11: memref<1x128xf32, #tpu.memory_space<vmem>>, %arg12: memref<2x128xf32, #tpu.memory_space<vmem>>, %arg13: memref<2x32xf32, #tpu.memory_space<vmem>>) attributes {dimension_semantics = [#tpu.dimension_semantics<arbitrary>], iteration_bounds = array<i64: 1>, scalar_prefetch = 0 : i64, scratch_operands = 1 : i64, tpu.core_type = #tpu.core_type<tc>, window_params = [{pipeline_mode = #tpu.pipeline_mode<synchronous>, transform_indices = @transform_0, window_bounds = array<i64: 2, 32>}, {pipeline_mode = #tpu.pipeline_mode<synchronous>, transform_indices = @transform_1, window_bounds = array<i64: 32, 64>}, {pipeline_mode = #tpu.pipeline_mode<synchronous>, transform_indices = @transform_2, window_bounds = array<i64: 1, 64>}, {pipeline_mode = #tpu.pipeline_mode<synchronous>, transform_indices = @transform_3, window_bounds = array<i64: 1, 64>}, {pipeline_mode = #tpu.pipeline_mode<synchronous>, transform_indices = @transform_4, window_bounds = array<i64: 1, 64>}, {pipeline_mode = #tpu.pipeline_mode<synchronous>, transform_indices = @transform_5, window_bounds = array<i64: 64, 32>}, {pipeline_mode = #tpu.pipeline_mode<synchronous>, transform_indices = @transform_6, window_bounds = array<i64: 1, 32>}, {pipeline_mode = #tpu.pipeline_mode<synchronous>, transform_indices = @transform_7, window_bounds = array<i64: 1, 32>}, {pipeline_mode = #tpu.pipeline_mode<synchronous>, transform_indices = @transform_8, window_bounds = array<i64: 1, 32>}, {transform_indices = @transform_9, window_bounds = array<i64: 32, 128>}, {transform_indices = @transform_10, window_bounds = array<i64: 1, 128>}, {transform_indices = @transform_11, window_bounds = array<i64: 2, 128>}]} {
    %c0_i32 = arith.constant 0 : i32
    %0 = arith.cmpi eq, %arg0, %c0_i32 : i32
    %1 = arith.extui %0 : i1 to i32
    %c0_i32_0 = arith.constant 0 : i32
    %2 = arith.cmpi ne, %1, %c0_i32_0 : i32
    scf.if %2 {
      %c0_10 = arith.constant 0 : index
      %c0_11 = arith.constant 0 : index
      %15 = vector.load %arg1[%c0_10, %c0_11] : memref<2x32xf32, #tpu.memory_space<vmem>>, vector<2x32xf32>
      %16 = arith.truncf %15 : vector<2x32xf32> to vector<2x32xbf16>
      %c0_12 = arith.constant 0 : index
      %c0_13 = arith.constant 0 : index
      %17 = vector.load %arg2[%c0_12, %c0_13] : memref<32x64xbf16, #tpu.memory_space<vmem>>, vector<32x64xbf16>
      %cst_14 = arith.constant dense<0.000000e+00> : vector<2x64xf32>
      %18 = tpu.matmul %16, %17, %cst_14 {dimension_numbers = #tpu.dot_dimension_numbers<[1], [0], [0], [1], [0, 0, 1, 1], [], []>} : vector<2x32xbf16>, vector<32x64xbf16>, vector<2x64xf32> -> vector<2x64xf32>
      %c0_15 = arith.constant 0 : index
      %c0_16 = arith.constant 0 : index
      %19 = vector.load %arg3[%c0_15, %c0_16] : memref<1x64xf32, #tpu.memory_space<vmem>>, vector<1x64xf32>
      %20 = vector.broadcast %19 : vector<1x64xf32> to vector<2x64xf32>
      %21 = arith.addf %18, %20 : vector<2x64xf32>
      %c0_17 = arith.constant 0 : index
      %c0_18 = arith.constant 0 : index
      %22 = vector.load %arg4[%c0_17, %c0_18] : memref<1x64xf32, #tpu.memory_space<vmem>>, vector<1x64xf32>
      %c0_19 = arith.constant 0 : index
      %c0_20 = arith.constant 0 : index
      %23 = vector.load %arg5[%c0_19, %c0_20] : memref<1x64xf32, #tpu.memory_space<vmem>>, vector<1x64xf32>
      %cst_21 = arith.constant dense<0.000000e+00> : vector<2xf32>
      %24 = vector.multi_reduction <add>, %21, %cst_21 [1] : vector<2x64xf32> to vector<2xf32>
      %25 = vector.shape_cast %24 : vector<2xf32> to vector<2x1xf32>
      %cst_22 = arith.constant 6.400000e+01 : f32
      %26 = vector.broadcast %cst_22 : f32 to vector<2x1xf32>
      %27 = arith.divf %25, %26 : vector<2x1xf32>
      %28 = vector.broadcast %27 : vector<2x1xf32> to vector<2x64xf32>
      %29 = arith.subf %21, %28 : vector<2x64xf32>
      %30 = arith.mulf %29, %29 : vector<2x64xf32>
      %cst_23 = arith.constant dense<0.000000e+00> : vector<2xf32>
      %31 = vector.multi_reduction <add>, %30, %cst_23 [1] : vector<2x64xf32> to vector<2xf32>
      %32 = vector.shape_cast %31 : vector<2xf32> to vector<2x1xf32>
      %cst_24 = arith.constant 6.400000e+01 : f32
      %33 = vector.broadcast %cst_24 : f32 to vector<2x1xf32>
      %34 = arith.divf %32, %33 : vector<2x1xf32>
      %35 = vector.broadcast %27 : vector<2x1xf32> to vector<2x64xf32>
      %36 = arith.subf %21, %35 : vector<2x64xf32>
      %cst_25 = arith.constant 9.99999974E-6 : f32
      %37 = vector.broadcast %cst_25 : f32 to vector<2x1xf32>
      %38 = arith.addf %34, %37 : vector<2x1xf32>
      %39 = math.rsqrt %38 : vector<2x1xf32>
      %40 = vector.broadcast %39 : vector<2x1xf32> to vector<2x64xf32>
      %41 = arith.mulf %36, %40 : vector<2x64xf32>
      %42 = vector.broadcast %22 : vector<1x64xf32> to vector<2x64xf32>
      %43 = arith.mulf %41, %42 : vector<2x64xf32>
      %44 = vector.broadcast %23 : vector<1x64xf32> to vector<2x64xf32>
      %45 = arith.addf %43, %44 : vector<2x64xf32>
      %cst_26 = arith.constant 5.000000e-01 : f32
      %46 = vector.broadcast %cst_26 : f32 to vector<2x64xf32>
      %47 = arith.mulf %46, %45 : vector<2x64xf32>
      %cst_27 = arith.constant 0.707106769 : f32
      %48 = vector.broadcast %cst_27 : f32 to vector<2x64xf32>
      %49 = arith.mulf %45, %48 : vector<2x64xf32>
      %50 = math.erf %49 : vector<2x64xf32>
      %cst_28 = arith.constant 1.000000e+00 : f32
      %51 = vector.broadcast %cst_28 : f32 to vector<2x64xf32>
      %52 = arith.addf %51, %50 : vector<2x64xf32>
      %53 = arith.mulf %47, %52 : vector<2x64xf32>
      %54 = arith.truncf %53 : vector<2x64xf32> to vector<2x64xbf16>
      %c0_29 = arith.constant 0 : index
      %c0_30 = arith.constant 0 : index
      %55 = vector.load %arg6[%c0_29, %c0_30] : memref<64x32xbf16, #tpu.memory_space<vmem>>, vector<64x32xbf16>
      %cst_31 = arith.constant dense<0.000000e+00> : vector<2x32xf32>
      %56 = tpu.matmul %54, %55, %cst_31 {dimension_numbers = #tpu.dot_dimension_numbers<[1], [0], [0], [1], [0, 0, 1, 1], [], []>} : vector<2x64xbf16>, vector<64x32xbf16>, vector<2x32xf32> -> vector<2x32xf32>
      %c0_32 = arith.constant 0 : index
      %c0_33 = arith.constant 0 : index
      %57 = vector.load %arg7[%c0_32, %c0_33] : memref<1x32xf32, #tpu.memory_space<vmem>>, vector<1x32xf32>
      %58 = vector.broadcast %57 : vector<1x32xf32> to vector<2x32xf32>
      %59 = arith.addf %56, %58 : vector<2x32xf32>
      %c0_34 = arith.constant 0 : index
      %c0_35 = arith.constant 0 : index
      %60 = vector.load %arg8[%c0_34, %c0_35] : memref<1x32xf32, #tpu.memory_space<vmem>>, vector<1x32xf32>
      %c0_36 = arith.constant 0 : index
      %c0_37 = arith.constant 0 : index
      %61 = vector.load %arg9[%c0_36, %c0_37] : memref<1x32xf32, #tpu.memory_space<vmem>>, vector<1x32xf32>
      %cst_38 = arith.constant dense<0.000000e+00> : vector<2xf32>
      %62 = vector.multi_reduction <add>, %59, %cst_38 [1] : vector<2x32xf32> to vector<2xf32>
      %63 = vector.shape_cast %62 : vector<2xf32> to vector<2x1xf32>
      %cst_39 = arith.constant 3.200000e+01 : f32
      %64 = vector.broadcast %cst_39 : f32 to vector<2x1xf32>
      %65 = arith.divf %63, %64 : vector<2x1xf32>
      %66 = vector.broadcast %65 : vector<2x1xf32> to vector<2x32xf32>
      %67 = arith.subf %59, %66 : vector<2x32xf32>
      %68 = arith.mulf %67, %67 : vector<2x32xf32>
      %cst_40 = arith.constant dense<0.000000e+00> : vector<2xf32>
      %69 = vector.multi_reduction <add>, %68, %cst_40 [1] : vector<2x32xf32> to vector<2xf32>
      %70 = vector.shape_cast %69 : vector<2xf32> to vector<2x1xf32>
      %cst_41 = arith.constant 3.200000e+01 : f32
      %71 = vector.broadcast %cst_41 : f32 to vector<2x1xf32>
      %72 = arith.divf %70, %71 : vector<2x1xf32>
      %73 = vector.broadcast %65 : vector<2x1xf32> to vector<2x32xf32>
      %74 = arith.subf %59, %73 : vector<2x32xf32>
      %cst_42 = arith.constant 9.99999974E-6 : f32
      %75 = vector.broadcast %cst_42 : f32 to vector<2x1xf32>
      %76 = arith.addf %72, %75 : vector<2x1xf32>
      %77 = math.rsqrt %76 : vector<2x1xf32>
      %78 = vector.broadcast %77 : vector<2x1xf32> to vector<2x32xf32>
      %79 = arith.mulf %74, %78 : vector<2x32xf32>
      %80 = vector.broadcast %60 : vector<1x32xf32> to vector<2x32xf32>
      %81 = arith.mulf %79, %80 : vector<2x32xf32>
      %82 = vector.broadcast %61 : vector<1x32xf32> to vector<2x32xf32>
      %83 = arith.addf %81, %82 : vector<2x32xf32>
      %cst_43 = arith.constant 5.000000e-01 : f32
      %84 = vector.broadcast %cst_43 : f32 to vector<2x32xf32>
      %85 = arith.mulf %84, %83 : vector<2x32xf32>
      %cst_44 = arith.constant 0.707106769 : f32
      %86 = vector.broadcast %cst_44 : f32 to vector<2x32xf32>
      %87 = arith.mulf %83, %86 : vector<2x32xf32>
      %88 = math.erf %87 : vector<2x32xf32>
      %cst_45 = arith.constant 1.000000e+00 : f32
      %89 = vector.broadcast %cst_45 : f32 to vector<2x32xf32>
      %90 = arith.addf %89, %88 : vector<2x32xf32>
      %91 = arith.mulf %85, %90 : vector<2x32xf32>
      %c0_46 = arith.constant 0 : index
      %c0_47 = arith.constant 0 : index
      %92 = vector.load %arg13[%c0_46, %c0_47] : memref<2x32xf32, #tpu.memory_space<vmem>>, vector<2x32xf32>
      tpu.vector_store %arg13[%c0_46, %c0_47], %91 {strides = array<i32>} : memref<2x32xf32, #tpu.memory_space<vmem>>, vector<2x32xf32>,
    } else {
    }
    %c0 = arith.constant 0 : index
    %c0_1 = arith.constant 0 : index
    %3 = vector.load %arg13[%c0, %c0_1] : memref<2x32xf32, #tpu.memory_space<vmem>>, vector<2x32xf32>
    %4 = arith.truncf %3 : vector<2x32xf32> to vector<2x32xbf16>
    %c0_2 = arith.constant 0 : index
    %c0_3 = arith.constant 0 : index
    %5 = vector.load %arg10[%c0_2, %c0_3] : memref<32x128xbf16, #tpu.memory_space<vmem>>, vector<32x128xbf16>
    %cst = arith.constant dense<0.000000e+00> : vector<2x128xf32>
    %6 = tpu.matmul %4, %5, %cst {dimension_numbers = #tpu.dot_dimension_numbers<[1], [0], [0], [1], [0, 0, 1, 1], [], []>} : vector<2x32xbf16>, vector<32x128xbf16>, vector<2x128xf32> -> vector<2x128xf32>
    %c0_4 = arith.constant 0 : index
    %c0_5 = arith.constant 0 : index
    %7 = vector.load %arg11[%c0_4, %c0_5] : memref<1x128xf32, #tpu.memory_space<vmem>>, vector<1x128xf32>
    %8 = vector.broadcast %7 : vector<1x128xf32> to vector<2x128xf32>
    %9 = arith.addf %6, %8 : vector<2x128xf32>
    %cst_6 = arith.constant -1.500000e+01 : f32
    %cst_7 = arith.constant 1.500000e+01 : f32
    %10 = vector.broadcast %cst_6 : f32 to vector<2x128xf32>
    %11 = arith.maximumf %10, %9 : vector<2x128xf32>
    %12 = vector.broadcast %cst_7 : f32 to vector<2x128xf32>
    %13 = arith.minimumf %12, %11 : vector<2x128xf32>
    %c0_8 = arith.constant 0 : index
    %c0_9 = arith.constant 0 : index
    %14 = vector.load %arg12[%c0_8, %c0_9] : memref<2x128xf32, #tpu.memory_space<vmem>>, vector<2x128xf32>
    tpu.vector_store %arg12[%c0_8, %c0_9], %13 {strides = array<i32>} : memref<2x128xf32, #tpu.memory_space<vmem>>, vector<2x128xf32>,
    return
  }
  func.func @transform_0(%arg0: i32) -> (i32, i32) {
    %c0_i32 = arith.constant 0 : i32
    %c0_i32_0 = arith.constant 0 : i32
    %c0_i32_1 = arith.constant 0 : i32
    return %c0_i32, %c0_i32_0 : i32, i32
  }
  func.func @transform_1(%arg0: i32) -> (i32, i32) {
    %c0_i32 = arith.constant 0 : i32
    %c0_i32_0 = arith.constant 0 : i32
    %c0_i32_1 = arith.constant 0 : i32
    return %c0_i32, %c0_i32_0 : i32, i32
  }
  func.func @transform_2(%arg0: i32) -> (i32, i32) {
    %c0_i32 = arith.constant 0 : i32
    %c0_i32_0 = arith.constant 0 : i32
    %c0_i32_1 = arith.constant 0 : i32
    return %c0_i32, %c0_i32_0 : i32, i32
  }
  func.func @transform_3(%arg0: i32) -> (i32, i32) {
    %c0_i32 = arith.constant 0 : i32
    %c0_i32_0 = arith.constant 0 : i32
    %c0_i32_1 = arith.constant 0 : i32
    return %c0_i32, %c0_i32_0 : i32, i32
  }
  func.func @transform_4(%arg0: i32) -> (i32, i32) {
    %c0_i32 = arith.constant 0 : i32
    %c0_i32_0 = arith.constant 0 : i32
    %c0_i32_1 = arith.constant 0 : i32
    return %c0_i32, %c0_i32_0 : i32, i32
  }
  func.func @transform_5(%arg0: i32) -> (i32, i32) {
    %c0_i32 = arith.constant 0 : i32
    %c0_i32_0 = arith.constant 0 : i32
    %c0_i32_1 = arith.constant 0 : i32
    return %c0_i32, %c0_i32_0 : i32, i32
  }
  func.func @transform_6(%arg0: i32) -> (i32, i32) {
    %c0_i32 = arith.constant 0 : i32
    %c0_i32_0 = arith.constant 0 : i32
    %c0_i32_1 = arith.constant 0 : i32
    return %c0_i32, %c0_i32_0 : i32, i32
  }
  func.func @transform_7(%arg0: i32) -> (i32, i32) {
    %c0_i32 = arith.constant 0 : i32
    %c0_i32_0 = arith.constant 0 : i32
    %c0_i32_1 = arith.constant 0 : i32
    return %c0_i32, %c0_i32_0 : i32, i32
  }
  func.func @transform_8(%arg0: i32) -> (i32, i32) {
    %c0_i32 = arith.constant 0 : i32
    %c0_i32_0 = arith.constant 0 : i32
    %c0_i32_1 = arith.constant 0 : i32
    return %c0_i32, %c0_i32_0 : i32, i32
  }
  func.func @transform_9(%arg0: i32) -> (i32, i32) {
    %c0_i32 = arith.constant 0 : i32
    %c0_i32_0 = arith.constant 0 : i32
    return %c0_i32, %arg0 : i32, i32
  }
  func.func @transform_10(%arg0: i32) -> (i32, i32) {
    %c0_i32 = arith.constant 0 : i32
    %c0_i32_0 = arith.constant 0 : i32
    return %c0_i32, %arg0 : i32, i32
  }
  func.func @transform_11(%arg0: i32) -> (i32, i32) {
    %c0_i32 = arith.constant 0 : i32
    %c0_i32_0 = arith.constant 0 : i32
    return %c0_i32, %arg0 : i32, i32
  }
}

module attributes {stable_mosaic.version = 11 : i64} {
  func.func @stem_pool_kernel(%arg0: i32, %arg1: i32, %arg2: memref<1x4x128xf32, #tpu.memory_space<vmem>>, %arg3: memref<32x4xf32, #tpu.memory_space<vmem>>, %arg4: memref<32x1xf32, #tpu.memory_space<vmem>>, %arg5: memref<1x32x1xf32, #tpu.memory_space<vmem>>, %arg6: memref<32x128xf32, #tpu.memory_space<vmem>>) attributes {dimension_semantics = [#tpu.dimension_semantics<parallel>, #tpu.dimension_semantics<arbitrary>], iteration_bounds = array<i64: 2, 2>, scalar_prefetch = 0 : i64, scratch_operands = 1 : i64, tpu.core_type = #tpu.core_type<tc>, window_params = [{transform_indices = @transform_0, window_bounds = array<i64: 1, 4, 128>}, {pipeline_mode = #tpu.pipeline_mode<synchronous>, transform_indices = @transform_1, window_bounds = array<i64: 32, 4>}, {pipeline_mode = #tpu.pipeline_mode<synchronous>, transform_indices = @transform_2, window_bounds = array<i64: 32, 1>}, {transform_indices = @transform_3, window_bounds = array<i64: 1, 32, 1>}]} {
    %c0_i32 = arith.constant 0 : i32
    %0 = arith.cmpi eq, %arg1, %c0_i32 : i32
    %1 = arith.extui %0 : i1 to i32
    %c0_i32_0 = arith.constant 0 : i32
    %2 = arith.cmpi ne, %1, %c0_i32_0 : i32
    scf.if %2 {
      %cst_12 = arith.constant 0.000000e+00 : f32
      %44 = vector.broadcast %cst_12 : f32 to vector<32x128xf32>
      %c0_13 = arith.constant 0 : index
      %c0_14 = arith.constant 0 : index
      %45 = vector.load %arg6[%c0_13, %c0_14] : memref<32x128xf32, #tpu.memory_space<vmem>>, vector<32x128xf32>
      tpu.vector_store %arg6[%c0_13, %c0_14], %44 {strides = array<i32>} : memref<32x128xf32, #tpu.memory_space<vmem>>, vector<32x128xf32>,
    } else {
    }
    %c0 = arith.constant 0 : index
    %c0_1 = arith.constant 0 : index
    %c0_2 = arith.constant 0 : index
    %3 = vector.load %arg2[%c0, %c0_1, %c0_2] : memref<1x4x128xf32, #tpu.memory_space<vmem>>, vector<1x4x128xf32>
    %4 = vector.shape_cast %3 : vector<1x4x128xf32> to vector<4x128xf32>
    %c0_3 = arith.constant 0 : index
    %c0_4 = arith.constant 0 : index
    %5 = vector.load %arg3[%c0_3, %c0_4] : memref<32x4xf32, #tpu.memory_space<vmem>>, vector<32x4xf32>
    %c0_5 = arith.constant 0 : index
    %c0_6 = arith.constant 0 : index
    %6 = vector.load %arg4[%c0_5, %c0_6] : memref<32x1xf32, #tpu.memory_space<vmem>>, vector<32x1xf32>
    %7 = vector.extract_strided_slice %5 {offsets = [0, 0], sizes = [32, 1], strides = [1, 1]} : vector<32x4xf32> to vector<32x1xf32>
    %8 = vector.extract_strided_slice %4 {offsets = [0, 0], sizes = [1, 128], strides = [1, 1]} : vector<4x128xf32> to vector<1x128xf32>
    %9 = vector.broadcast %7 : vector<32x1xf32> to vector<32x128xf32>
    %10 = vector.broadcast %8 : vector<1x128xf32> to vector<32x128xf32>
    %11 = arith.mulf %9, %10 : vector<32x128xf32>
    %12 = vector.extract_strided_slice %5 {offsets = [0, 1], sizes = [32, 1], strides = [1, 1]} : vector<32x4xf32> to vector<32x1xf32>
    %13 = vector.extract_strided_slice %4 {offsets = [1, 0], sizes = [1, 128], strides = [1, 1]} : vector<4x128xf32> to vector<1x128xf32>
    %14 = vector.broadcast %12 : vector<32x1xf32> to vector<32x128xf32>
    %15 = vector.broadcast %13 : vector<1x128xf32> to vector<32x128xf32>
    %16 = arith.mulf %14, %15 : vector<32x128xf32>
    %17 = arith.addf %11, %16 : vector<32x128xf32>
    %18 = vector.extract_strided_slice %5 {offsets = [0, 2], sizes = [32, 1], strides = [1, 1]} : vector<32x4xf32> to vector<32x1xf32>
    %19 = vector.extract_strided_slice %4 {offsets = [2, 0], sizes = [1, 128], strides = [1, 1]} : vector<4x128xf32> to vector<1x128xf32>
    %20 = vector.broadcast %18 : vector<32x1xf32> to vector<32x128xf32>
    %21 = vector.broadcast %19 : vector<1x128xf32> to vector<32x128xf32>
    %22 = arith.mulf %20, %21 : vector<32x128xf32>
    %23 = arith.addf %17, %22 : vector<32x128xf32>
    %24 = vector.extract_strided_slice %5 {offsets = [0, 3], sizes = [32, 1], strides = [1, 1]} : vector<32x4xf32> to vector<32x1xf32>
    %25 = vector.extract_strided_slice %4 {offsets = [3, 0], sizes = [1, 128], strides = [1, 1]} : vector<4x128xf32> to vector<1x128xf32>
    %26 = vector.broadcast %24 : vector<32x1xf32> to vector<32x128xf32>
    %27 = vector.broadcast %25 : vector<1x128xf32> to vector<32x128xf32>
    %28 = arith.mulf %26, %27 : vector<32x128xf32>
    %29 = arith.addf %23, %28 : vector<32x128xf32>
    %30 = vector.broadcast %6 : vector<32x1xf32> to vector<32x128xf32>
    %31 = arith.addf %29, %30 : vector<32x128xf32>
    %32 = arith.negf %31 : vector<32x128xf32>
    %33 = math.exp %32 : vector<32x128xf32>
    %cst = arith.constant 1.000000e+00 : f32
    %34 = vector.broadcast %cst : f32 to vector<32x128xf32>
    %35 = arith.addf %34, %33 : vector<32x128xf32>
    %36 = arith.divf %34, %35 : vector<32x128xf32>
    %37 = arith.mulf %31, %36 : vector<32x128xf32>
    %c0_7 = arith.constant 0 : index
    %c0_8 = arith.constant 0 : index
    %38 = vector.load %arg6[%c0_7, %c0_8] : memref<32x128xf32, #tpu.memory_space<vmem>>, vector<32x128xf32>
    %39 = arith.addf %38, %37 : vector<32x128xf32>
    %c0_9 = arith.constant 0 : index
    %c0_10 = arith.constant 0 : index
    %40 = vector.load %arg6[%c0_9, %c0_10] : memref<32x128xf32, #tpu.memory_space<vmem>>, vector<32x128xf32>
    tpu.vector_store %arg6[%c0_9, %c0_10], %39 {strides = array<i32>} : memref<32x128xf32, #tpu.memory_space<vmem>>, vector<32x128xf32>,
    %c1_i32 = arith.constant 1 : i32
    %41 = arith.cmpi eq, %arg1, %c1_i32 : i32
    %42 = arith.extui %41 : i1 to i32
    %c0_i32_11 = arith.constant 0 : i32
    %43 = arith.cmpi ne, %42, %c0_i32_11 : i32
    scf.if %43 {
      %c0_12 = arith.constant 0 : index
      %c0_13 = arith.constant 0 : index
      %44 = vector.load %arg6[%c0_12, %c0_13] : memref<32x128xf32, #tpu.memory_space<vmem>>, vector<32x128xf32>
      %cst_14 = arith.constant dense<0.000000e+00> : vector<32xf32>
      %45 = vector.multi_reduction <add>, %44, %cst_14 [1] : vector<32x128xf32> to vector<32xf32>
      %46 = vector.shape_cast %45 : vector<32xf32> to vector<32x1xf32>
      %cst_15 = arith.constant 3.906250e-03 : f32
      %47 = vector.broadcast %cst_15 : f32 to vector<32x1xf32>
      %48 = arith.mulf %46, %47 : vector<32x1xf32>
      %49 = vector.shape_cast %48 : vector<32x1xf32> to vector<1x32x1xf32>
      %c0_16 = arith.constant 0 : index
      %c0_17 = arith.constant 0 : index
      %c0_18 = arith.constant 0 : index
      %50 = vector.load %arg5[%c0_16, %c0_17, %c0_18] : memref<1x32x1xf32, #tpu.memory_space<vmem>>, vector<1x32x1xf32>
      tpu.vector_store %arg5[%c0_16, %c0_17, %c0_18], %49 {strides = array<i32>} : memref<1x32x1xf32, #tpu.memory_space<vmem>>, vector<1x32x1xf32>,
    } else {
    }
    return
  }
  func.func @transform_0(%arg0: i32, %arg1: i32) -> (i32, i32, i32) {
    %c0_i32 = arith.constant 0 : i32
    %c0_i32_0 = arith.constant 0 : i32
    return %arg0, %c0_i32, %arg1 : i32, i32, i32
  }
  func.func @transform_1(%arg0: i32, %arg1: i32) -> (i32, i32) {
    %c0_i32 = arith.constant 0 : i32
    %c0_i32_0 = arith.constant 0 : i32
    %c0_i32_1 = arith.constant 0 : i32
    return %c0_i32, %c0_i32_0 : i32, i32
  }
  func.func @transform_2(%arg0: i32, %arg1: i32) -> (i32, i32) {
    %c0_i32 = arith.constant 0 : i32
    %c0_i32_0 = arith.constant 0 : i32
    %c0_i32_1 = arith.constant 0 : i32
    return %c0_i32, %c0_i32_0 : i32, i32
  }
  func.func @transform_3(%arg0: i32, %arg1: i32) -> (i32, i32, i32) {
    %c0_i32 = arith.constant 0 : i32
    %c0_i32_0 = arith.constant 0 : i32
    %c0_i32_1 = arith.constant 0 : i32
    return %arg0, %c0_i32, %c0_i32_0 : i32, i32, i32
  }
}

</mosaic_0001>

<llo_original>
// kernel: initial_only_tagger_forward.2
$region0: #{initial_only_tagger_forward.2}
  #allocation0 [shape = 'u32[]', space=smem, size = 0x4, offset = 0x4, fixed_abs, tag = 'smem constant byte address 0x4 - core index']
  #allocation1 [shape = 'u32[144,128]{1,0:T(1,128)}', space=vmem, size = 0x12000, scoped, tag = 'internal scratch']
  #allocation2 [shape = 'f32[32,128]{1,0:T(8,128)}', space=vmem, size = 0x4000, scoped, tag = 'scratch operand']
  %s0 = inlined_call_operand.vmem [shape: f32[2,4,256], index: 0, kind: input, shape index: {}]
  %s1 = inlined_call_operand.vmem [shape: f32[32,4], index: 1, kind: input, shape index: {}]
  %s2 = inlined_call_operand.vmem [shape: f32[32,1], index: 2, kind: input, shape index: {}]
  %s3 = inlined_call_operand.vmem [shape: f32[2,32,1], index: 3, kind: output, shape index: {}]
  %s4 = sld [smem:[#allocation0]]
  $region53: #{initial_only_tagger_forward.2} parent=0
    _
  %s6 = ssub.s32 1, %s4
  %s7 = scalar_select 0, %s6, %s4
  loop: start=0, step=1, limit=6
  $region2: #{initial_only_tagger_forward.2} parent=0 // loop_pre_header
    _
  $region3: #{initial_only_tagger_forward.2} parent=0 // loop_header
    %s9 = sphi 0, %s13
    %p10 = scmp.ge.s32.totalorder %s9, 6
    %s16 = sphi 0, %s28
    %s17 = sphi 0, %s24
    %s18 = sphi 0, %s16
    %s19 = sphi 0, %s17
    %s20 = sphi 0, %s18
    %s21 = sphi 0, %s19
    %s33 = sphi 0, %s35
    %s36 = sphi 0, %s33
    %s37 = sphi 0, %s36
    %s53 = sphi 0, %s37
    %s57 = sphi 0, %s57
    %s59 = sphi 0, %s57
    %s60 = sphi 0, %s59
    %s74 = sphi 0, %s60
    %s78 = sphi 0, %s78
    %s80 = sphi 0, %s78
    %s81 = sphi 0, %s80
    %s95 = sphi 0, %s81
    %s101 = sphi 0, %s103
    %s104 = sphi 0, %s101
    %s105 = sphi 0, %s104
    %s121 = sphi 0, %s105
  $region4: #{initial_only_tagger_forward.2} parent=0 // loop_header_branch
    %12 = sbr.rel (%p10) target = $region8
  $region5: #{initial_only_tagger_forward.2} parent=0 // loop_body
    %s14 = ssub.s32 %s9, 1
    %s15 = ssub.s32 %s9, 2
    %s22 = sadd.s32 1, %s17
    %p23 = scmp.ge.s32.totalorder %s22, 2
    %s24 = scalar_select %p23, 0, %s22
    %s25 = sadd.s32 1, %s16
    %s26 = scalar_select %p23, %s25, %s16
    %p27 = scmp.ge.s32.totalorder %s26, 2
    %s28 = scalar_select %p27, 0, %s26
    %s29 = ssub.s32 %s16, %s28
    %s30 = ssub.s32 %s17, %s24
    %s31 = sor.u32 %s29, %s30
    %p32 = scmp.eq.s32.totalorder %s31, 0
    %s34 = sadd.s32 %s33, 1
    %s35 = scalar_select %p32, %s33, %s34
    %p38 = pneg %p32
    %p39 = scmp.eq.s32.totalorder %s9, 3
    %p40 = por %p38, %p39
    %p41 = scmp.ne.s32.totalorder %s33, %s36
    %p42 = scmp.eq.s32.totalorder %s9, 0
    %p43 = por %p41, %p42
    %p44 = scmp.ne.s32.totalorder %s33, %s36
    %p45 = scmp.eq.s32.totalorder %s14, 3
    %p46 = por %p44, %p45
    %p47 = scmp.ne.s32.totalorder %s36, %s37
    %p48 = scmp.eq.s32.totalorder %s14, 0
    %p49 = por %p47, %p48
    %p50 = scmp.ne.s32.totalorder %s36, %s37
    %p51 = scmp.eq.s32.totalorder %s15, 3
    %p52 = por %p50, %p51
    %p54 = scmp.ne.s32.totalorder %s37, %s53
    %p55 = scmp.eq.s32.totalorder %s15, 0
    %p56 = por %p54, %p55
    %s58 = sadd.s32 %s57, 1
    %p61 = scmp.eq.s32.totalorder %s9, 3
    %p62 = scmp.ne.s32.totalorder %s57, %s59
    %p63 = scmp.eq.s32.totalorder %s9, 0
    %p64 = por %p62, %p63
    %p65 = scmp.ne.s32.totalorder %s57, %s59
    %p66 = scmp.eq.s32.totalorder %s14, 3
    %p67 = por %p65, %p66
    %p68 = scmp.ne.s32.totalorder %s59, %s60
    %p69 = scmp.eq.s32.totalorder %s14, 0
    %p70 = por %p68, %p69
    %p71 = scmp.ne.s32.totalorder %s59, %s60
    %p72 = scmp.eq.s32.totalorder %s15, 3
    %p73 = por %p71, %p72
    %p75 = scmp.ne.s32.totalorder %s60, %s74
    %p76 = scmp.eq.s32.totalorder %s15, 0
    %p77 = por %p75, %p76
    %s79 = sadd.s32 %s78, 1
    %p82 = scmp.eq.s32.totalorder %s9, 3
    %p83 = scmp.ne.s32.totalorder %s78, %s80
    %p84 = scmp.eq.s32.totalorder %s9, 0
    %p85 = por %p83, %p84
    %p86 = scmp.ne.s32.totalorder %s78, %s80
    %p87 = scmp.eq.s32.totalorder %s14, 3
    %p88 = por %p86, %p87
    %p89 = scmp.ne.s32.totalorder %s80, %s81
    %p90 = scmp.eq.s32.totalorder %s14, 0
    %p91 = por %p89, %p90
    %p92 = scmp.ne.s32.totalorder %s80, %s81
    %p93 = scmp.eq.s32.totalorder %s15, 3
    %p94 = por %p92, %p93
    %p96 = scmp.ne.s32.totalorder %s81, %s95
    %p97 = scmp.eq.s32.totalorder %s15, 0
    %p98 = por %p96, %p97
    %s99 = ssub.s32 %s16, %s28
    %p100 = scmp.eq.s32.totalorder %s99, 0
    %s102 = sadd.s32 %s101, 1
    %s103 = scalar_select %p100, %s101, %s102
    %p106 = pneg %p100
    %p107 = scmp.eq.s32.totalorder %s9, 3
    %p108 = por %p106, %p107
    %p109 = scmp.ne.s32.totalorder %s101, %s104
    %p110 = scmp.eq.s32.totalorder %s9, 0
    %p111 = por %p109, %p110
    %p112 = scmp.ne.s32.totalorder %s101, %s104
    %p113 = scmp.eq.s32.totalorder %s14, 3
    %p114 = por %p112, %p113
    %p115 = scmp.ne.s32.totalorder %s104, %s105
    %p116 = scmp.eq.s32.totalorder %s14, 0
    %p117 = por %p115, %p116
    %p118 = scmp.ne.s32.totalorder %s104, %s105
    %p119 = scmp.eq.s32.totalorder %s15, 3
    %p120 = por %p118, %p119
    %p122 = scmp.ne.s32.totalorder %s105, %s121
    %p123 = scmp.eq.s32.totalorder %s15, 0
    %p124 = por %p122, %p123
    %p125 = scmp.le.s32.totalorder 1, %s9
    %p126 = scmp.lt.s32.totalorder %s9, 5
    %p127 = pnand %p125, %p126
    %p128 = pneg %p127
    // Predicated region
    $region9: #{initial_only_tagger_forward.2} parent=5 // pred_check
      _
    $region10: #{initial_only_tagger_forward.2} parent=5 // pred_check_branch
      %130 = sbr.rel (%p127) target = $region12
    $region11: #{initial_only_tagger_forward.2} parent=5 // pred_region
      %s131 = ssub.s32 %s9, 1
      // Predicated region
      $region13: #{initial_only_tagger_forward.2} parent=11 // pred_check
        %p132 = pneg %p70
      $region14: #{initial_only_tagger_forward.2} parent=11 // pred_check_branch
        %134 = sbr.rel (%p132) target = $region16
      $region15: #{initial_only_tagger_forward.2} parent=11 // pred_region
        _
      $region16: #{initial_only_tagger_forward.2} parent=11 // pred_fallthru
        _
      // Predicated region
      $region17: #{initial_only_tagger_forward.2} parent=11 // pred_check
        %p135 = pneg %p91
      $region18: #{initial_only_tagger_forward.2} parent=11 // pred_check_branch
        %137 = sbr.rel (%p135) target = $region20
      $region19: #{initial_only_tagger_forward.2} parent=11 // pred_region
        _
      $region20: #{initial_only_tagger_forward.2} parent=11 // pred_fallthru
        _
    $region12: #{initial_only_tagger_forward.2} parent=5 // pred_fallthru
      _
    %p138 = scmp.lt.s32.totalorder %s9, 4
    // Predicated region
    $region21: #{initial_only_tagger_forward.2} parent=5 // pred_check
      %p139 = pneg %p138
    $region22: #{initial_only_tagger_forward.2} parent=5 // pred_check_branch
      %141 = sbr.rel (%p139) target = $region24
    $region23: #{initial_only_tagger_forward.2} parent=5 // pred_region
      // Predicated region
      $region25: #{initial_only_tagger_forward.2} parent=23 // pred_check
        %p142 = pneg %p43
      $region26: #{initial_only_tagger_forward.2} parent=23 // pred_check_branch
        %144 = sbr.rel (%p142) target = $region28
      $region27: #{initial_only_tagger_forward.2} parent=23 // pred_region
        %p145 = scmp.lt.s32.totalorder %s16, 1
        %s146 = scalar_select %p145, %s16, 1
        %p147 = scmp.lt.s32.totalorder %s17, 1
        %s148 = scalar_select %p147, %s17, 1
        %s149 = smul.addr %s146, 2
        %s150 = sadd.s32 %s148, %s149
        %s151 = smul.addr %s150, 4
        %s152 = scalar_lea.vmem %s0, %s151
      $region28: #{initial_only_tagger_forward.2} parent=23 // pred_fallthru
        _
    $region24: #{initial_only_tagger_forward.2} parent=5 // pred_fallthru
      _
    %p153 = scmp.le.s32.totalorder 1, %s9
    %p154 = scmp.lt.s32.totalorder %s9, 5
    %p155 = pnand %p153, %p154
    %p156 = pneg %p155
    // Predicated region
    $region29: #{initial_only_tagger_forward.2} parent=5 // pred_check
      _
    $region30: #{initial_only_tagger_forward.2} parent=5 // pred_check_branch
      %158 = sbr.rel (%p155) target = $region32
    $region31: #{initial_only_tagger_forward.2} parent=5 // pred_region
      %s159 = ssub.s32 %s9, 1
      %p160 = scmp.lt.s32.totalorder %s18, 1
      %s161 = scalar_select %p160, %s18, 1
      %p162 = scmp.lt.s32.totalorder %s19, 1
      %s163 = scalar_select %p162, %s19, 1
      %s164 = smul.addr %s161, 2
      %s165 = sadd.s32 %s163, %s164
      %s166 = smul.addr %s165, 4
      %s167 = scalar_lea.vmem %s0, %s166
      %p168 = pneg %p49
      %p169 = pneg %p46
      %p170 = pneg %p70
      %p171 = pneg %p67
      %p172 = pneg %p91
      %p173 = pneg %p88
      %p174 = pneg %p117
      %p175 = pneg %p114
      %p176 = scmp.lt.s32.totalorder %s18, 1
      %s177 = scalar_select %p176, %s18, 1
      %s178 = smul.addr %s177, 4
      %s179 = smul.addr %s178, 8
      %s180 = scalar_lea.vmem %s3, %s179
      %p181 = scmp.lt.s32.totalorder %s18, 1
      %s182 = scalar_select %p181, %s18, 1
      %p183 = scmp.lt.s32.totalorder %s19, 1
      %s184 = scalar_select %p183, %s19, 1
      %s185 = smul.addr %s182, 2
      %s186 = sadd.s32 %s184, %s185
      %s187 = smul.addr %s186, 4
      %s188 = scalar_lea.vmem %s0, %s187
      %p189 = scmp.lt.s32.totalorder %s18, 1
      %s190 = scalar_select %p189, %s18, 1
      %s191 = smul.addr %s190, 4
      %s192 = smul.addr %s191, 8
      %s193 = scalar_lea.vmem %s3, %s192
      %p194 = scmp.eq.s32.totalorder %s19, 0
      // Predicated region
      $region33: #{initial_only_tagger_forward.2} parent=31 // pred_check
        %p195 = pneg %p194
      $region34: #{initial_only_tagger_forward.2} parent=31 // pred_check_branch
        %197 = sbr.rel (%p195) target = $region36
      $region35: #{initial_only_tagger_forward.2} parent=31 // pred_region
        %198 = vst [vmem:[#allocation2] sm:$0xff] 0.0
        %199 = vst [vmem:[#allocation2 + $0x8] sm:$0xff] 0.0
        %200 = vst [vmem:[#allocation2 + $0x10] sm:$0xff] 0.0
        %201 = vst [vmem:[#allocation2 + $0x18] sm:$0xff] 0.0
      $region36: #{initial_only_tagger_forward.2} parent=31 // pred_fallthru
        _
      %v202 = vld [vmem:[%s188] sm:$0xf]
      %v203 = vld [vmem:[%s1] sm:$0xff]
      %v204 = vld [vmem:[%s1 + $0x8] sm:$0xff]
      %v205 = vld [vmem:[%s1 + $0x10] sm:$0xff]
      %v206 = vld [vmem:[%s1 + $0x18] sm:$0xff]
      %v207 = vld [vmem:[%s2] sm:$0xff]
      %v208 = vld [vmem:[%s2 + $0x8] sm:$0xff]
      %v209 = vld [vmem:[%s2 + $0x10] sm:$0xff]
      %v210 = vld [vmem:[%s2 + $0x18] sm:$0xff]
      %212 = vset.pattern.permute.xlu0 0
      %213 = vperm.xlu0 %212, %v203
      %v214 = vpop.permute.xlu0 %213
      %217 = vset.pattern.permute.xlu0 0
      %218 = vperm.xlu0 %217, %v204
      %v219 = vpop.permute.xlu0 %218
      %222 = vset.pattern.permute.xlu0 0
      %223 = vperm.xlu0 %222, %v205
      %v224 = vpop.permute.xlu0 %223
      %227 = vset.pattern.permute.xlu0 0
      %228 = vperm.xlu0 %227, %v206
      %v229 = vpop.permute.xlu0 %228
      %v231 = vlaneseq
      %v232 = vshrl.u32 %v231, 7
      %v233 = vsub.s32 0, %v232
      %v234 = vrot.slane %v202, %v233
      %v235 = vmul.f32 %v214, %v234
      %v236 = vmul.f32 %v219, %v234
      %v237 = vmul.f32 %v224, %v234
      %v238 = vmul.f32 %v229, %v234
      %239 = vset.pattern.permute.xlu0 1
      %240 = vperm.xlu0 %239, %v203
      %v241 = vpop.permute.xlu0 %240
      %243 = vset.pattern.permute.xlu0 1
      %244 = vperm.xlu0 %243, %v204
      %v245 = vpop.permute.xlu0 %244
      %247 = vset.pattern.permute.xlu0 1
      %248 = vperm.xlu0 %247, %v205
      %v249 = vpop.permute.xlu0 %248
      %251 = vset.pattern.permute.xlu0 1
      %252 = vperm.xlu0 %251, %v206
      %v253 = vpop.permute.xlu0 %252
      %v255 = vlaneseq
      %v256 = vshrl.u32 %v255, 7
      %v257 = vsub.s32 1, %v256
      %v258 = vrot.slane %v202, %v257
      %v259 = vmul.f32 %v241, %v258
      %v260 = vmul.f32 %v245, %v258
      %v261 = vmul.f32 %v249, %v258
      %v262 = vmul.f32 %v253, %v258
      %v263 = vadd.f32 %v235, %v259
      %v264 = vadd.f32 %v236, %v260
      %v265 = vadd.f32 %v237, %v261
      %v266 = vadd.f32 %v238, %v262
      %267 = vset.pattern.permute.xlu0 2
      %268 = vperm.xlu0 %267, %v203
      %v269 = vpop.permute.xlu0 %268
      %271 = vset.pattern.permute.xlu0 2
      %272 = vperm.xlu0 %271, %v204
      %v273 = vpop.permute.xlu0 %272
      %275 = vset.pattern.permute.xlu0 2
      %276 = vperm.xlu0 %275, %v205
      %v277 = vpop.permute.xlu0 %276
      %279 = vset.pattern.permute.xlu0 2
      %280 = vperm.xlu0 %279, %v206
      %v281 = vpop.permute.xlu0 %280
      %v283 = vlaneseq
      %v284 = vshrl.u32 %v283, 7
      %v285 = vsub.s32 2, %v284
      %v286 = vrot.slane %v202, %v285
      %v287 = vmul.f32 %v269, %v286
      %v288 = vmul.f32 %v273, %v286
      %v289 = vmul.f32 %v277, %v286
      %v290 = vmul.f32 %v281, %v286
      %v291 = vadd.f32 %v263, %v287
      %v292 = vadd.f32 %v264, %v288
      %v293 = vadd.f32 %v265, %v289
      %v294 = vadd.f32 %v266, %v290
      %295 = vset.pattern.permute.xlu0 3
      %296 = vperm.xlu0 %295, %v203
      %v297 = vpop.permute.xlu0 %296
      %299 = vset.pattern.permute.xlu0 3
      %300 = vperm.xlu0 %299, %v204
      %v301 = vpop.permute.xlu0 %300
      %303 = vset.pattern.permute.xlu0 3
      %304 = vperm.xlu0 %303, %v205
      %v305 = vpop.permute.xlu0 %304
      %307 = vset.pattern.permute.xlu0 3
      %308 = vperm.xlu0 %307, %v206
      %v309 = vpop.permute.xlu0 %308
      %v311 = vlaneseq
      %v312 = vshrl.u32 %v311, 7
      %v313 = vsub.s32 3, %v312
      %v314 = vrot.slane %v202, %v313
      %v315 = vmul.f32 %v297, %v314
      %v316 = vmul.f32 %v301, %v314
      %v317 = vmul.f32 %v305, %v314
      %v318 = vmul.f32 %v309, %v314
      %v319 = vadd.f32 %v291, %v315
      %v320 = vadd.f32 %v292, %v316
      %v321 = vadd.f32 %v293, %v317
      %v322 = vadd.f32 %v294, %v318
      %324 = vset.pattern.permute.xlu0 0
      %325 = vperm.xlu0 %324, %v207
      %v326 = vpop.permute.xlu0 %325
      %329 = vset.pattern.permute.xlu0 0
      %330 = vperm.xlu0 %329, %v208
      %v331 = vpop.permute.xlu0 %330
      %334 = vset.pattern.permute.xlu0 0
      %335 = vperm.xlu0 %334, %v209
      %v336 = vpop.permute.xlu0 %335
      %339 = vset.pattern.permute.xlu0 0
      %340 = vperm.xlu0 %339, %v210
      %v341 = vpop.permute.xlu0 %340
      %v343 = vadd.f32 %v319, %v326
      %v344 = vadd.f32 %v320, %v331
      %v345 = vadd.f32 %v321, %v336
      %v346 = vadd.f32 %v322, %v341
      %v347 = vxor.u32 %v343, 2147483648
      %v348 = vxor.u32 %v344, 2147483648
      %v349 = vxor.u32 %v345, 2147483648
      %v350 = vxor.u32 %v346, 2147483648
      %v351 = vmul.f32 %v347, 1.442695
      %v352 = vpow.pop %v351
      %v353 = vmul.f32 %v348, 1.442695
      %v354 = vpow.pop %v353
      %v355 = vmul.f32 %v349, 1.442695
      %v356 = vpow.pop %v355
      %v357 = vmul.f32 %v350, 1.442695
      %v358 = vpow.pop %v357
      %v359 = vadd.f32 %v352, 1.0
      %v360 = vadd.f32 %v354, 1.0
      %v361 = vadd.f32 %v356, 1.0
      %v362 = vadd.f32 %v358, 1.0
      %v363 = vrcp.pop %v359
      %v364 = vmul.f32 1.0, %v363
      %v365 = vrcp.pop %v360
      %v366 = vmul.f32 1.0, %v365
      %v367 = vrcp.pop %v361
      %v368 = vmul.f32 1.0, %v367
      %v369 = vrcp.pop %v362
      %v370 = vmul.f32 1.0, %v369
      %v371 = vmul.f32 %v343, %v364
      %v372 = vmul.f32 %v344, %v366
      %v373 = vmul.f32 %v345, %v368
      %v374 = vmul.f32 %v346, %v370
      %v375 = vld [vmem:[#allocation2] sm:$0xff]
      %v376 = vld [vmem:[#allocation2 + $0x8] sm:$0xff]
      %v377 = vld [vmem:[#allocation2 + $0x10] sm:$0xff]
      %v378 = vld [vmem:[#allocation2 + $0x18] sm:$0xff]
      %v379 = vadd.f32 %v375, %v371
      %v380 = vadd.f32 %v376, %v372
      %v381 = vadd.f32 %v377, %v373
      %v382 = vadd.f32 %v378, %v374
      %383 = vst [vmem:[#allocation2] sm:$0xff] %v379
      %384 = vst [vmem:[#allocation2 + $0x8] sm:$0xff] %v380
      %385 = vst [vmem:[#allocation2 + $0x10] sm:$0xff] %v381
      %386 = vst [vmem:[#allocation2 + $0x18] sm:$0xff] %v382
      %p387 = scmp.eq.s32.totalorder %s19, 1
      // Predicated region
      $region37: #{initial_only_tagger_forward.2} parent=31 // pred_check
        %p388 = pneg %p387
      $region38: #{initial_only_tagger_forward.2} parent=31 // pred_check_branch
        %390 = sbr.rel (%p388) target = $region40
      $region39: #{initial_only_tagger_forward.2} parent=31 // pred_region
        %v391 = vld [vmem:[#allocation2] sm:$0xff]
        %v392 = vld [vmem:[#allocation2 + $0x8] sm:$0xff]
        %v393 = vld [vmem:[#allocation2 + $0x10] sm:$0xff]
        %v394 = vld [vmem:[#allocation2 + $0x18] sm:$0xff]
        %395 = vadd.xlane.f32.xlu0 %v391
        %v396 = vpop.xlane.xlu0 %395
        %397 = vadd.xlane.f32.xlu0 %v392
        %v398 = vpop.xlane.xlu0 %397
        %399 = vadd.xlane.f32.xlu0 %v393
        %v400 = vpop.xlane.xlu0 %399
        %401 = vadd.xlane.f32.xlu0 %v394
        %v402 = vpop.xlane.xlu0 %401
        %v403 = vmul.f32 %v396, 0.00390625
        %v404 = vmul.f32 %v398, 0.00390625
        %v405 = vmul.f32 %v400, 0.00390625
        %v406 = vmul.f32 %v402, 0.00390625
        %vm407 = vcmask 7168
        %408 = vst.msk [vmem:[%s193] sm:$0xff] %vm407, %v403
        %409 = vst.msk [vmem:[%s193 + $0x8] sm:$0xff] %vm407, %v404
        %410 = vst.msk [vmem:[%s193 + $0x10] sm:$0xff] %vm407, %v405
        %411 = vst.msk [vmem:[%s193 + $0x18] sm:$0xff] %vm407, %v406
      $region40: #{initial_only_tagger_forward.2} parent=31 // pred_fallthru
        _
      %p412 = scmp.lt.s32.totalorder %s18, 1
      %s413 = scalar_select %p412, %s18, 1
      %s414 = smul.addr %s413, 4
      %s415 = smul.addr %s414, 8
      %s416 = scalar_lea.vmem %s3, %s415
      // Predicated region
      $region41: #{initial_only_tagger_forward.2} parent=31 // pred_check
        %p417 = pneg %p114
      $region42: #{initial_only_tagger_forward.2} parent=31 // pred_check_branch
        %419 = sbr.rel (%p417) target = $region44
      $region43: #{initial_only_tagger_forward.2} parent=31 // pred_region
        _
      $region44: #{initial_only_tagger_forward.2} parent=31 // pred_fallthru
        _
    $region32: #{initial_only_tagger_forward.2} parent=5 // pred_fallthru
      _
    %p420 = scmp.le.s32.totalorder 2, %s9
    // Predicated region
    $region45: #{initial_only_tagger_forward.2} parent=5 // pred_check
      %p421 = pneg %p420
    $region46: #{initial_only_tagger_forward.2} parent=5 // pred_check_branch
      %423 = sbr.rel (%p421) target = $region48
    $region47: #{initial_only_tagger_forward.2} parent=5 // pred_region
      %s424 = ssub.s32 %s9, 2
      // Predicated region
      $region49: #{initial_only_tagger_forward.2} parent=47 // pred_check
        %p425 = pneg %p120
      $region50: #{initial_only_tagger_forward.2} parent=47 // pred_check_branch
        %427 = sbr.rel (%p425) target = $region52
      $region51: #{initial_only_tagger_forward.2} parent=47 // pred_region
        %p428 = scmp.lt.s32.totalorder %s20, 1
        %s429 = scalar_select %p428, %s20, 1
        %s430 = smul.addr %s429, 4
        %s431 = smul.addr %s430, 8
        %s432 = scalar_lea.vmem %s3, %s431
      $region52: #{initial_only_tagger_forward.2} parent=47 // pred_fallthru
        _
    $region48: #{initial_only_tagger_forward.2} parent=5 // pred_fallthru
      _
  $region6: #{initial_only_tagger_forward.2} parent=0 // loop_footer
    %s13 = sadd.s32 1, %s9
  $region7: #{initial_only_tagger_forward.2} parent=0 // loop_footer_branch
    %8 = sbr.rel target = $region3
  $region8: #{initial_only_tagger_forward.2} parent=0 // loop_exit
    _

// kernel: initial_only_tagger_forward.3
$region0: #{initial_only_tagger_forward.3}
  #allocation0 [shape = 'u32[]', space=smem, size = 0x4, offset = 0x4, fixed_abs, tag = 'smem constant byte address 0x4 - core index']
  #allocation1 [shape = 'u32[144,128]{1,0:T(1,128)}', space=vmem, size = 0x12000, scoped, tag = 'internal scratch']
  #allocation2 [shape = 'f32[2,32]{1,0:T(2,128)}', space=vmem, size = 0x400, scoped, tag = 'scratch operand']
  %s0 = inlined_call_operand.vmem [shape: f32[2,32], index: 0, kind: input, shape index: {}]
  %s1 = inlined_call_operand.vmem [shape: bf16[32,64], index: 1, kind: input, shape index: {}]
  %s2 = inlined_call_operand.vmem [shape: f32[1,64], index: 2, kind: input, shape index: {}]
  %s3 = inlined_call_operand.vmem [shape: f32[1,64], index: 3, kind: input, shape index: {}]
  %s4 = inlined_call_operand.vmem [shape: f32[1,64], index: 4, kind: input, shape index: {}]
  %s5 = inlined_call_operand.vmem [shape: bf16[64,32], index: 5, kind: input, shape index: {}]
  %s6 = inlined_call_operand.vmem [shape: f32[1,32], index: 6, kind: input, shape index: {}]
  %s7 = inlined_call_operand.vmem [shape: f32[1,32], index: 7, kind: input, shape index: {}]
  %s8 = inlined_call_operand.vmem [shape: f32[1,32], index: 8, kind: input, shape index: {}]
  %s9 = inlined_call_operand.vmem [shape: bf16[32,128], index: 9, kind: input, shape index: {}]
  %s10 = inlined_call_operand.vmem [shape: f32[1,128], index: 10, kind: input, shape index: {}]
  %s11 = inlined_call_operand.vmem [shape: f32[2,128], index: 11, kind: output, shape index: {}]
  %s12 = sld [smem:[#allocation0]]
  $region58: #{initial_only_tagger_forward.3} parent=0
    _
  %s14 = ssub.s32 1, %s12
  %s15 = scalar_select 0, %s14, %s12
  // Predicated region
  $region2: #{initial_only_tagger_forward.3} parent=0 // pred_check
    _
  $region3: #{initial_only_tagger_forward.3} parent=0 // pred_check_branch
    %17 = sbr.rel (0) target = $region5
  $region4: #{initial_only_tagger_forward.3} parent=0 // pred_region
    _
  $region5: #{initial_only_tagger_forward.3} parent=0 // pred_fallthru
    _
  // Predicated region
  $region6: #{initial_only_tagger_forward.3} parent=0 // pred_check
    _
  $region7: #{initial_only_tagger_forward.3} parent=0 // pred_check_branch
    %19 = sbr.rel (0) target = $region9
  $region8: #{initial_only_tagger_forward.3} parent=0 // pred_region
    _
  $region9: #{initial_only_tagger_forward.3} parent=0 // pred_fallthru
    _
  // Predicated region
  $region10: #{initial_only_tagger_forward.3} parent=0 // pred_check
    _
  $region11: #{initial_only_tagger_forward.3} parent=0 // pred_check_branch
    %21 = sbr.rel (0) target = $region13
  $region12: #{initial_only_tagger_forward.3} parent=0 // pred_region
    _
  $region13: #{initial_only_tagger_forward.3} parent=0 // pred_fallthru
    _
  // Predicated region
  $region14: #{initial_only_tagger_forward.3} parent=0 // pred_check
    _
  $region15: #{initial_only_tagger_forward.3} parent=0 // pred_check_branch
    %23 = sbr.rel (0) target = $region17
  $region16: #{initial_only_tagger_forward.3} parent=0 // pred_region
    _
  $region17: #{initial_only_tagger_forward.3} parent=0 // pred_fallthru
    _
  // Predicated region
  $region18: #{initial_only_tagger_forward.3} parent=0 // pred_check
    _
  $region19: #{initial_only_tagger_forward.3} parent=0 // pred_check_branch
    %25 = sbr.rel (0) target = $region21
  $region20: #{initial_only_tagger_forward.3} parent=0 // pred_region
    _
  $region21: #{initial_only_tagger_forward.3} parent=0 // pred_fallthru
    _
  // Predicated region
  $region22: #{initial_only_tagger_forward.3} parent=0 // pred_check
    _
  $region23: #{initial_only_tagger_forward.3} parent=0 // pred_check_branch
    %27 = sbr.rel (0) target = $region25
  $region24: #{initial_only_tagger_forward.3} parent=0 // pred_region
    _
  $region25: #{initial_only_tagger_forward.3} parent=0 // pred_fallthru
    _
  // Predicated region
  $region26: #{initial_only_tagger_forward.3} parent=0 // pred_check
    _
  $region27: #{initial_only_tagger_forward.3} parent=0 // pred_check_branch
    %29 = sbr.rel (0) target = $region29
  $region28: #{initial_only_tagger_forward.3} parent=0 // pred_region
    _
  $region29: #{initial_only_tagger_forward.3} parent=0 // pred_fallthru
    _
  // Predicated region
  $region30: #{initial_only_tagger_forward.3} parent=0 // pred_check
    _
  $region31: #{initial_only_tagger_forward.3} parent=0 // pred_check_branch
    %31 = sbr.rel (0) target = $region33
  $region32: #{initial_only_tagger_forward.3} parent=0 // pred_region
    _
  $region33: #{initial_only_tagger_forward.3} parent=0 // pred_fallthru
    _
  // Predicated region
  $region34: #{initial_only_tagger_forward.3} parent=0 // pred_check
    _
  $region35: #{initial_only_tagger_forward.3} parent=0 // pred_check_branch
    %33 = sbr.rel (0) target = $region37
  $region36: #{initial_only_tagger_forward.3} parent=0 // pred_region
    _
  $region37: #{initial_only_tagger_forward.3} parent=0 // pred_fallthru
    _
  // Predicated region
  $region38: #{initial_only_tagger_forward.3} parent=0 // pred_check
    _
  $region39: #{initial_only_tagger_forward.3} parent=0 // pred_check_branch
    %35 = sbr.rel (0) target = $region41
  $region40: #{initial_only_tagger_forward.3} parent=0 // pred_region
    _
  $region41: #{initial_only_tagger_forward.3} parent=0 // pred_fallthru
    _
  // Predicated region
  $region42: #{initial_only_tagger_forward.3} parent=0 // pred_check
    _
  $region43: #{initial_only_tagger_forward.3} parent=0 // pred_check_branch
    %37 = sbr.rel (0) target = $region45
  $region44: #{initial_only_tagger_forward.3} parent=0 // pred_region
    _
  $region45: #{initial_only_tagger_forward.3} parent=0 // pred_fallthru
    _
  %p39 = scmp.eq.s32.totalorder 0, 0
  // Predicated region
  $region46: #{initial_only_tagger_forward.3} parent=0 // pred_check
    %p40 = pneg %p39
  $region47: #{initial_only_tagger_forward.3} parent=0 // pred_check_branch
    %42 = sbr.rel (%p40) target = $region49
  $region48: #{initial_only_tagger_forward.3} parent=0 // pred_region
    %v43 = vld [vmem:[%s0] sm:$0x3]
    %v44 = vpack.c.bf16 %v43, %v43
    %v45 = vld [vmem:[%s1] sm:$0xf]
    %v46 = vld [vmem:[%s1 + $0x4] sm:$0xf]
    %v47 = vld [vmem:[%s1 + $0x8] sm:$0xf]
    %v48 = vld [vmem:[%s1 + $0xc] sm:$0xf]
    %v49 = vld [vmem:[%s2] sm:$0x1]
    %v51 = vlaneseq
    %v52 = vshrl.u32 %v51, 7
    %v53 = vsub.s32 0, %v52
    %v54 = vrot.slane %v49, %v53
    %v60 = vunpack.c.l.b16 %v45
    %v61 = vunpack.c.l.b16 %v46
    %v62 = vunpack.c.l.b16 %v47
    %v63 = vunpack.c.l.b16 %v48
    %v64 = vpack.c.b16 %v61, %v60
    %v65 = vpack.c.b16 %v63, %v62
    %vm68 = vcmask 261120
    %v70 = vsel %vm68, %v44, 0
    %72 = vmatprep.subr.bf16.mxu0 0
    %73 = vmatpush1.bf16.msra.mxu0 0
    %74 = vmatprep.subr.bf16.mxu0 0
    %75 = vmatpush1.bf16.msra.mxu0 0
    %76 = vmatprep.subr.bf16.mxu0 0
    %77 = vmatpush1.bf16.msra.mxu0 0
    %78 = vmatprep.subr.bf16.mxu0 0
    %79 = vmatpush1.bf16.msra.mxu0 0
    %80 = vmatprep.subr.bf16.mxu0 0
    %81 = vmatpush1.bf16.msra.mxu0 0
    %82 = vmatprep.subr.bf16.mxu0 0
    %83 = vmatpush1.bf16.msra.mxu0 0
    %84 = vmatprep.subr.bf16.mxu0 0
    %85 = vmatpush1.bf16.msra.mxu0 %v65
    %86 = vmatprep.subr.bf16.mxu0 0
    %87 = vmatpush1.bf16.msra.mxu0 %v64
    %88 = vmatprep.subr.bf16.mxu0 0
    %89 = vmatpush2.bf16.msra.mxu0 0
    %90 = vmatprep.subr.bf16.mxu0 0
    %91 = vmatpush2.bf16.msra.mxu0 0
    %92 = vmatprep.subr.bf16.mxu0 0
    %93 = vmatpush2.bf16.msra.mxu0 0
    %94 = vmatprep.subr.bf16.mxu0 0
    %95 = vmatpush2.bf16.msra.mxu0 0
    %96 = vmatprep.subr.bf16.mxu0 0
    %97 = vmatpush2.bf16.msra.mxu0 0
    %98 = vmatprep.subr.bf16.mxu0 0
    %99 = vmatpush2.bf16.msra.mxu0 0
    %100 = vmatprep.subr.bf16.mxu0 0
    %101 = vmatpush2.bf16.msra.mxu0 0
    %102 = vmatprep.subr.bf16.mxu0 0
    %103 = vmatpush2.bf16.msra.mxu0 0
    %104 = vmatprep.mubr.bf16.mxu0 0
    %105 = vmatmul.mubr.bf16.gmra.mxu0 %v70
    %v106 = vpop.f32.mrf.mxu0
    %v107 = vadd.f32 %v54, %v106
    %v108 = vpop.f32.mrf.mxu0
    %v109 = vpop.f32.mrf.mxu0
    %v110 = vpop.f32.mrf.mxu0
    %111 = vdwg.mxu0
    %v112 = vld [vmem:[%s3] sm:$0x1]
    %v113 = vld [vmem:[%s4] sm:$0x1]
    %vm114 = vcmask 517120
    %v115 = vsel %vm114, %v107, 0.0
    %116 = vadd.xlane.f32.xlu0 %v115
    %v117 = vpop.xlane.xlu0 %116
    %v118 = vrcp.pop 64.0
    %v119 = vmul.f32 %v117, %v118
    %v120 = vsub.f32 %v107, %v119
    %v121 = vmul.f32 %v120, %v120
    %v122 = vsel %vm114, %v121, 0.0
    %123 = vadd.xlane.f32.xlu0 %v122
    %v124 = vpop.xlane.xlu0 %123
    %v125 = vmul.f32 %v124, %v118
    %v126 = vadd.f32 %v125, 1e-05
    %v127 = vrsqrt.pop %v126
    %v128 = vmul.f32 %v120, %v127
    %v130 = vlaneseq
    %v131 = vshrl.u32 %v130, 7
    %v132 = vsub.s32 0, %v131
    %v133 = vrot.slane %v112, %v132
    %v135 = vmul.f32 %v128, %v133
    %v137 = vlaneseq
    %v138 = vshrl.u32 %v137, 7
    %v139 = vsub.s32 0, %v138
    %v140 = vrot.slane %v113, %v139
    %v142 = vadd.f32 %v135, %v140
    %v143 = vmul.f32 %v142, 0.5
    %v144 = vmul.f32 %v142, 0.70710677
    %v145 = verf.f32.pop %v144
    %v146 = vadd.f32 %v145, 1.0
    %v147 = vmul.f32 %v143, %v146
    %v148 = vpack.c.bf16 %v147, %v147
    %v149 = vld [vmem:[%s5] sm:$0xf]
    %v150 = vld [vmem:[%s5 + $0x4] sm:$0xf]
    %v151 = vld [vmem:[%s5 + $0x8] sm:$0xf]
    %v152 = vld [vmem:[%s5 + $0xc] sm:$0xf]
    %v153 = vld [vmem:[%s5 + $0x10] sm:$0xf]
    %v154 = vld [vmem:[%s5 + $0x14] sm:$0xf]
    %v155 = vld [vmem:[%s5 + $0x18] sm:$0xf]
    %v156 = vld [vmem:[%s5 + $0x1c] sm:$0xf]
    %v157 = vld [vmem:[%s6] sm:$0x1]
    %v159 = vlaneseq
    %v160 = vshrl.u32 %v159, 7
    %v161 = vsub.s32 0, %v160
    %v162 = vrot.slane %v157, %v161
    %v172 = vunpack.c.l.b16 %v149
    %v173 = vunpack.c.l.b16 %v150
    %v174 = vunpack.c.l.b16 %v151
    %v175 = vunpack.c.l.b16 %v152
    %v176 = vunpack.c.l.b16 %v153
    %v177 = vunpack.c.l.b16 %v154
    %v178 = vunpack.c.l.b16 %v155
    %v179 = vunpack.c.l.b16 %v156
    %v180 = vpack.c.b16 %v173, %v172
    %v181 = vpack.c.b16 %v175, %v174
    %v182 = vpack.c.b16 %v177, %v176
    %v183 = vpack.c.b16 %v179, %v178
    %vm188 = vcmask 523264
    %v190 = vsel %vm188, %v148, 0
    %192 = vmatprep.subr.bf16.mxu0 0
    %193 = vmatpush1.bf16.msra.mxu0 0
    %194 = vmatprep.subr.bf16.mxu0 0
    %195 = vmatpush1.bf16.msra.mxu0 0
    %196 = vmatprep.subr.bf16.mxu0 0
    %197 = vmatpush1.bf16.msra.mxu0 0
    %198 = vmatprep.subr.bf16.mxu0 0
    %199 = vmatpush1.bf16.msra.mxu0 0
    %200 = vmatprep.subr.bf16.mxu0 0
    %201 = vmatpush1.bf16.msra.mxu0 %v183
    %202 = vmatprep.subr.bf16.mxu0 0
    %203 = vmatpush1.bf16.msra.mxu0 %v182
    %204 = vmatprep.subr.bf16.mxu0 0
    %205 = vmatpush1.bf16.msra.mxu0 %v181
    %206 = vmatprep.subr.bf16.mxu0 0
    %207 = vmatpush1.bf16.msra.mxu0 %v180
    %208 = vmatprep.subr.bf16.mxu0 0
    %209 = vmatpush2.bf16.msra.mxu0 0
    %210 = vmatprep.subr.bf16.mxu0 0
    %211 = vmatpush2.bf16.msra.mxu0 0
    %212 = vmatprep.subr.bf16.mxu0 0
    %213 = vmatpush2.bf16.msra.mxu0 0
    %214 = vmatprep.subr.bf16.mxu0 0
    %215 = vmatpush2.bf16.msra.mxu0 0
    %216 = vmatprep.subr.bf16.mxu0 0
    %217 = vmatpush2.bf16.msra.mxu0 0
    %218 = vmatprep.subr.bf16.mxu0 0
    %219 = vmatpush2.bf16.msra.mxu0 0
    %220 = vmatprep.subr.bf16.mxu0 0
    %221 = vmatpush2.bf16.msra.mxu0 0
    %222 = vmatprep.subr.bf16.mxu0 0
    %223 = vmatpush2.bf16.msra.mxu0 0
    %224 = vmatprep.mubr.bf16.mxu0 0
    %225 = vmatmul.mubr.bf16.gmra.mxu0 %v190
    %v226 = vpop.f32.mrf.mxu0
    %v227 = vadd.f32 %v162, %v226
    %v228 = vpop.f32.mrf.mxu0
    %v229 = vpop.f32.mrf.mxu0
    %v230 = vpop.f32.mrf.mxu0
    %231 = vdwg.mxu0
    %v232 = vld [vmem:[%s7] sm:$0x1]
    %v233 = vld [vmem:[%s8] sm:$0x1]
    %vm234 = vcmask 254976
    %v235 = vsel %vm234, %v227, 0.0
    %236 = vadd.xlane.f32.xlu0 %v235
    %v237 = vpop.xlane.xlu0 %236
    %v238 = vrcp.pop 32.0
    %v239 = vmul.f32 %v237, %v238
    %v240 = vsub.f32 %v227, %v239
    %v241 = vmul.f32 %v240, %v240
    %v242 = vsel %vm234, %v241, 0.0
    %243 = vadd.xlane.f32.xlu0 %v242
    %v244 = vpop.xlane.xlu0 %243
    %v245 = vmul.f32 %v244, %v238
    %v246 = vadd.f32 %v245, 1e-05
    %v247 = vrsqrt.pop %v246
    %v248 = vmul.f32 %v240, %v247
    %v250 = vlaneseq
    %v251 = vshrl.u32 %v250, 7
    %v252 = vsub.s32 0, %v251
    %v253 = vrot.slane %v232, %v252
    %v255 = vmul.f32 %v248, %v253
    %v257 = vlaneseq
    %v258 = vshrl.u32 %v257, 7
    %v259 = vsub.s32 0, %v258
    %v260 = vrot.slane %v233, %v259
    %v262 = vadd.f32 %v255, %v260
    %v263 = vmul.f32 %v262, 0.5
    %v264 = vmul.f32 %v262, 0.70710677
    %v265 = verf.f32.pop %v264
    %v266 = vadd.f32 %v265, 1.0
    %v267 = vmul.f32 %v263, %v266
    %268 = vst.msk [vmem:[#allocation2] sm:$0x3] %vm234, %v267
  $region49: #{initial_only_tagger_forward.3} parent=0 // pred_fallthru
    _
  %v269 = vld [vmem:[#allocation2] sm:$0x3]
  %v270 = vpack.c.bf16 %v269, %v269
  %v271 = vld [vmem:[%s9] sm:$0xf]
  %v272 = vld [vmem:[%s9 + $0x4] sm:$0xf]
  %v273 = vld [vmem:[%s9 + $0x8] sm:$0xf]
  %v274 = vld [vmem:[%s9 + $0xc] sm:$0xf]
  %v275 = vld [vmem:[%s10] sm:$0x1]
  %v277 = vlaneseq
  %v278 = vshrl.u32 %v277, 7
  %v279 = vsub.s32 0, %v278
  %v280 = vrot.slane %v275, %v279
  %v286 = vunpack.c.l.b16 %v271
  %v287 = vunpack.c.l.b16 %v272
  %v288 = vunpack.c.l.b16 %v273
  %v289 = vunpack.c.l.b16 %v274
  %v290 = vpack.c.b16 %v287, %v286
  %v291 = vpack.c.b16 %v289, %v288
  %vm294 = vcmask 261120
  %v296 = vsel %vm294, %v270, 0
  %298 = vmatprep.subr.bf16.mxu0 0
  %299 = vmatpush1.bf16.msra.mxu0 0
  %300 = vmatprep.subr.bf16.mxu0 0
  %301 = vmatpush1.bf16.msra.mxu0 0
  %302 = vmatprep.subr.bf16.mxu0 0
  %303 = vmatpush1.bf16.msra.mxu0 0
  %304 = vmatprep.subr.bf16.mxu0 0
  %305 = vmatpush1.bf16.msra.mxu0 0
  %306 = vmatprep.subr.bf16.mxu0 0
  %307 = vmatpush1.bf16.msra.mxu0 0
  %308 = vmatprep.subr.bf16.mxu0 0
  %309 = vmatpush1.bf16.msra.mxu0 0
  %310 = vmatprep.subr.bf16.mxu0 0
  %311 = vmatpush1.bf16.msra.mxu0 %v291
  %312 = vmatprep.subr.bf16.mxu0 0
  %313 = vmatpush1.bf16.msra.mxu0 %v290
  %314 = vmatprep.subr.bf16.mxu0 0
  %315 = vmatpush2.bf16.msra.mxu0 0
  %316 = vmatprep.subr.bf16.mxu0 0
  %317 = vmatpush2.bf16.msra.mxu0 0
  %318 = vmatprep.subr.bf16.mxu0 0
  %319 = vmatpush2.bf16.msra.mxu0 0
  %320 = vmatprep.subr.bf16.mxu0 0
  %321 = vmatpush2.bf16.msra.mxu0 0
  %322 = vmatprep.subr.bf16.mxu0 0
  %323 = vmatpush2.bf16.msra.mxu0 0
  %324 = vmatprep.subr.bf16.mxu0 0
  %325 = vmatpush2.bf16.msra.mxu0 0
  %326 = vmatprep.subr.bf16.mxu0 0
  %327 = vmatpush2.bf16.msra.mxu0 0
  %328 = vmatprep.subr.bf16.mxu0 0
  %329 = vmatpush2.bf16.msra.mxu0 0
  %330 = vmatprep.mubr.bf16.mxu0 0
  %331 = vmatmul.mubr.bf16.gmra.mxu0 %v296
  %v332 = vpop.f32.mrf.mxu0
  %v333 = vadd.f32 %v280, %v332
  %v334 = vpop.f32.mrf.mxu0
  %v335 = vpop.f32.mrf.mxu0
  %v336 = vpop.f32.mrf.mxu0
  %337 = vdwg.mxu0
  %v338 = vmax.f32 %v333, -15.0
  %v339 = vmin.f32 %v338, 15.0
  %340 = vst [vmem:[%s11] sm:$0x3] %v339
  // Predicated region
  $region50: #{initial_only_tagger_forward.3} parent=0 // pred_check
    _
  $region51: #{initial_only_tagger_forward.3} parent=0 // pred_check_branch
    %342 = sbr.rel (0) target = $region53
  $region52: #{initial_only_tagger_forward.3} parent=0 // pred_region
    _
  $region53: #{initial_only_tagger_forward.3} parent=0 // pred_fallthru
    _
  // Predicated region
  $region54: #{initial_only_tagger_forward.3} parent=0 // pred_check
    _
  $region55: #{initial_only_tagger_forward.3} parent=0 // pred_check_branch
    %344 = sbr.rel (0) target = $region57
  $region56: #{initial_only_tagger_forward.3} parent=0 // pred_region
    _
  $region57: #{initial_only_tagger_forward.3} parent=0 // pred_fallthru
    _

// kernel: initial_only_tagger_forward.3
$region0: #{initial_only_tagger_forward.3}
  #allocation0 [shape = 'u32[]', space=smem, size = 0x4, offset = 0x4, fixed_abs, tag = 'smem constant byte address 0x4 - core index']
  #allocation1 [shape = 'u32[144,128]{1,0:T(1,128)}', space=vmem, size = 0x12000, scoped, tag = 'internal scratch']
  #allocation2 [shape = 'f32[2,32]{1,0:T(2,128)}', space=vmem, size = 0x400, scoped, tag = 'scratch operand']
  %s0 = inlined_call_operand.vmem [shape: f32[2,32], index: 0, kind: input, shape index: {}]
  %s1 = inlined_call_operand.vmem [shape: bf16[32,64], index: 1, kind: input, shape index: {}]
  %s2 = inlined_call_operand.vmem [shape: f32[1,64], index: 2, kind: input, shape index: {}]
  %s3 = inlined_call_operand.vmem [shape: f32[1,64], index: 3, kind: input, shape index: {}]
  %s4 = inlined_call_operand.vmem [shape: f32[1,64], index: 4, kind: input, shape index: {}]
  %s5 = inlined_call_operand.vmem [shape: bf16[64,32], index: 5, kind: input, shape index: {}]
  %s6 = inlined_call_operand.vmem [shape: f32[1,32], index: 6, kind: input, shape index: {}]
  %s7 = inlined_call_operand.vmem [shape: f32[1,32], index: 7, kind: input, shape index: {}]
  %s8 = inlined_call_operand.vmem [shape: f32[1,32], index: 8, kind: input, shape index: {}]
  %s9 = inlined_call_operand.vmem [shape: bf16[32,128], index: 9, kind: input, shape index: {}]
  %s10 = inlined_call_operand.vmem [shape: f32[1,128], index: 10, kind: input, shape index: {}]
  %s11 = inlined_call_operand.vmem [shape: f32[2,128], index: 11, kind: output, shape index: {}]
  %s12 = sld [smem:[#allocation0]]
  $region58: #{initial_only_tagger_forward.3} parent=0
    _
  %s14 = ssub.s32 1, %s12
  %s15 = scalar_select 0, %s14, %s12
  // Predicated region
  $region2: #{initial_only_tagger_forward.3} parent=0 // pred_check
    _
  $region3: #{initial_only_tagger_forward.3} parent=0 // pred_check_branch
    %17 = sbr.rel (0) target = $region5
  $region4: #{initial_only_tagger_forward.3} parent=0 // pred_region
    _
  $region5: #{initial_only_tagger_forward.3} parent=0 // pred_fallthru
    _
  // Predicated region
  $region6: #{initial_only_tagger_forward.3} parent=0 // pred_check
    _
  $region7: #{initial_only_tagger_forward.3} parent=0 // pred_check_branch
    %19 = sbr.rel (0) target = $region9
  $region8: #{initial_only_tagger_forward.3} parent=0 // pred_region
    _
  $region9: #{initial_only_tagger_forward.3} parent=0 // pred_fallthru
    _
  // Predicated region
  $region10: #{initial_only_tagger_forward.3} parent=0 // pred_check
    _
  $region11: #{initial_only_tagger_forward.3} parent=0 // pred_check_branch
    %21 = sbr.rel (0) target = $region13
  $region12: #{initial_only_tagger_forward.3} parent=0 // pred_region
    _
  $region13: #{initial_only_tagger_forward.3} parent=0 // pred_fallthru
    _
  // Predicated region
  $region14: #{initial_only_tagger_forward.3} parent=0 // pred_check
    _
  $region15: #{initial_only_tagger_forward.3} parent=0 // pred_check_branch
    %23 = sbr.rel (0) target = $region17
  $region16: #{initial_only_tagger_forward.3} parent=0 // pred_region
    _
  $region17: #{initial_only_tagger_forward.3} parent=0 // pred_fallthru
    _
  // Predicated region
  $region18: #{initial_only_tagger_forward.3} parent=0 // pred_check
    _
  $region19: #{initial_only_tagger_forward.3} parent=0 // pred_check_branch
    %25 = sbr.rel (0) target = $region21
  $region20: #{initial_only_tagger_forward.3} parent=0 // pred_region
    _
  $region21: #{initial_only_tagger_forward.3} parent=0 // pred_fallthru
    _
  // Predicated region
  $region22: #{initial_only_tagger_forward.3} parent=0 // pred_check
    _
  $region23: #{initial_only_tagger_forward.3} parent=0 // pred_check_branch
    %27 = sbr.rel (0) target = $region25
  $region24: #{initial_only_tagger_forward.3} parent=0 // pred_region
    _
  $region25: #{initial_only_tagger_forward.3} parent=0 // pred_fallthru
    _
  // Predicated region
  $region26: #{initial_only_tagger_forward.3} parent=0 // pred_check
    _
  $region27: #{initial_only_tagger_forward.3} parent=0 // pred_check_branch
    %29 = sbr.rel (0) target = $region29
  $region28: #{initial_only_tagger_forward.3} parent=0 // pred_region
    _
  $region29: #{initial_only_tagger_forward.3} parent=0 // pred_fallthru
    _
  // Predicated region
  $region30: #{initial_only_tagger_forward.3} parent=0 // pred_check
    _
  $region31: #{initial_only_tagger_forward.3} parent=0 // pred_check_branch
    %31 = sbr.rel (0) target = $region33
  $region32: #{initial_only_tagger_forward.3} parent=0 // pred_region
    _
  $region33: #{initial_only_tagger_forward.3} parent=0 // pred_fallthru
    _
  // Predicated region
  $region34: #{initial_only_tagger_forward.3} parent=0 // pred_check
    _
  $region35: #{initial_only_tagger_forward.3} parent=0 // pred_check_branch
    %33 = sbr.rel (0) target = $region37
  $region36: #{initial_only_tagger_forward.3} parent=0 // pred_region
    _
  $region37: #{initial_only_tagger_forward.3} parent=0 // pred_fallthru
    _
  // Predicated region
  $region38: #{initial_only_tagger_forward.3} parent=0 // pred_check
    _
  $region39: #{initial_only_tagger_forward.3} parent=0 // pred_check_branch
    %35 = sbr.rel (0) target = $region41
  $region40: #{initial_only_tagger_forward.3} parent=0 // pred_region
    _
  $region41: #{initial_only_tagger_forward.3} parent=0 // pred_fallthru
    _
  // Predicated region
  $region42: #{initial_only_tagger_forward.3} parent=0 // pred_check
    _
  $region43: #{initial_only_tagger_forward.3} parent=0 // pred_check_branch
    %37 = sbr.rel (0) target = $region45
  $region44: #{initial_only_tagger_forward.3} parent=0 // pred_region
    _
  $region45: #{initial_only_tagger_forward.3} parent=0 // pred_fallthru
    _
  %p39 = scmp.eq.s32.totalorder 0, 0
  // Predicated region
  $region46: #{initial_only_tagger_forward.3} parent=0 // pred_check
    %p40 = pneg %p39
  $region47: #{initial_only_tagger_forward.3} parent=0 // pred_check_branch
    %42 = sbr.rel (%p40) target = $region49
  $region48: #{initial_only_tagger_forward.3} parent=0 // pred_region
    %v43 = vld [vmem:[%s0] sm:$0x3]
    %v44 = vpack.c.bf16 %v43, %v43
    %v45 = vld [vmem:[%s1] sm:$0xf]
    %v46 = vld [vmem:[%s1 + $0x4] sm:$0xf]
    %v47 = vld [vmem:[%s1 + $0x8] sm:$0xf]
    %v48 = vld [vmem:[%s1 + $0xc] sm:$0xf]
    %v49 = vld [vmem:[%s2] sm:$0x1]
    %v51 = vlaneseq
    %v52 = vshrl.u32 %v51, 7
    %v53 = vsub.s32 0, %v52
    %v54 = vrot.slane %v49, %v53
    %v60 = vunpack.c.l.b16 %v45
    %v61 = vunpack.c.l.b16 %v46
    %v62 = vunpack.c.l.b16 %v47
    %v63 = vunpack.c.l.b16 %v48
    %v64 = vpack.c.b16 %v61, %v60
    %v65 = vpack.c.b16 %v63, %v62
    %vm68 = vcmask 261120
    %v70 = vsel %vm68, %v44, 0
    %72 = vmatprep.subr.bf16.mxu0 0
    %73 = vmatpush1.bf16.msra.mxu0 0
    %74 = vmatprep.subr.bf16.mxu0 0
    %75 = vmatpush1.bf16.msra.mxu0 0
    %76 = vmatprep.subr.bf16.mxu0 0
    %77 = vmatpush1.bf16.msra.mxu0 0
    %78 = vmatprep.subr.bf16.mxu0 0
    %79 = vmatpush1.bf16.msra.mxu0 0
    %80 = vmatprep.subr.bf16.mxu0 0
    %81 = vmatpush1.bf16.msra.mxu0 0
    %82 = vmatprep.subr.bf16.mxu0 0
    %83 = vmatpush1.bf16.msra.mxu0 0
    %84 = vmatprep.subr.bf16.mxu0 0
    %85 = vmatpush1.bf16.msra.mxu0 %v65
    %86 = vmatprep.subr.bf16.mxu0 0
    %87 = vmatpush1.bf16.msra.mxu0 %v64
    %88 = vmatprep.subr.bf16.mxu0 0
    %89 = vmatpush2.bf16.msra.mxu0 0
    %90 = vmatprep.subr.bf16.mxu0 0
    %91 = vmatpush2.bf16.msra.mxu0 0
    %92 = vmatprep.subr.bf16.mxu0 0
    %93 = vmatpush2.bf16.msra.mxu0 0
    %94 = vmatprep.subr.bf16.mxu0 0
    %95 = vmatpush2.bf16.msra.mxu0 0
    %96 = vmatprep.subr.bf16.mxu0 0
    %97 = vmatpush2.bf16.msra.mxu0 0
    %98 = vmatprep.subr.bf16.mxu0 0
    %99 = vmatpush2.bf16.msra.mxu0 0
    %100 = vmatprep.subr.bf16.mxu0 0
    %101 = vmatpush2.bf16.msra.mxu0 0
    %102 = vmatprep.subr.bf16.mxu0 0
    %103 = vmatpush2.bf16.msra.mxu0 0
    %104 = vmatprep.mubr.bf16.mxu0 0
    %105 = vmatmul.mubr.bf16.gmra.mxu0 %v70
    %v106 = vpop.f32.mrf.mxu0
    %v107 = vadd.f32 %v54, %v106
    %v108 = vpop.f32.mrf.mxu0
    %v109 = vpop.f32.mrf.mxu0
    %v110 = vpop.f32.mrf.mxu0
    %111 = vdwg.mxu0
    %v112 = vld [vmem:[%s3] sm:$0x1]
    %v113 = vld [vmem:[%s4] sm:$0x1]
    %vm114 = vcmask 517120
    %v115 = vsel %vm114, %v107, 0.0
    %116 = vadd.xlane.f32.xlu0 %v115
    %v117 = vpop.xlane.xlu0 %116
    %v118 = vrcp.pop 64.0
    %v119 = vmul.f32 %v117, %v118
    %v120 = vsub.f32 %v107, %v119
    %v121 = vmul.f32 %v120, %v120
    %v122 = vsel %vm114, %v121, 0.0
    %123 = vadd.xlane.f32.xlu0 %v122
    %v124 = vpop.xlane.xlu0 %123
    %v125 = vmul.f32 %v124, %v118
    %v126 = vadd.f32 %v125, 1e-05
    %v127 = vrsqrt.pop %v126
    %v128 = vmul.f32 %v120, %v127
    %v130 = vlaneseq
    %v131 = vshrl.u32 %v130, 7
    %v132 = vsub.s32 0, %v131
    %v133 = vrot.slane %v112, %v132
    %v135 = vmul.f32 %v128, %v133
    %v137 = vlaneseq
    %v138 = vshrl.u32 %v137, 7
    %v139 = vsub.s32 0, %v138
    %v140 = vrot.slane %v113, %v139
    %v142 = vadd.f32 %v135, %v140
    %v143 = vmul.f32 %v142, 0.5
    %v144 = vmul.f32 %v142, 0.70710677
    %v145 = verf.f32.pop %v144
    %v146 = vadd.f32 %v145, 1.0
    %v147 = vmul.f32 %v143, %v146
    %v148 = vpack.c.bf16 %v147, %v147
    %v149 = vld [vmem:[%s5] sm:$0xf]
    %v150 = vld [vmem:[%s5 + $0x4] sm:$0xf]
    %v151 = vld [vmem:[%s5 + $0x8] sm:$0xf]
    %v152 = vld [vmem:[%s5 + $0xc] sm:$0xf]
    %v153 = vld [vmem:[%s5 + $0x10] sm:$0xf]
    %v154 = vld [vmem:[%s5 + $0x14] sm:$0xf]
    %v155 = vld [vmem:[%s5 + $0x18] sm:$0xf]
    %v156 = vld [vmem:[%s5 + $0x1c] sm:$0xf]
    %v157 = vld [vmem:[%s6] sm:$0x1]
    %v159 = vlaneseq
    %v160 = vshrl.u32 %v159, 7
    %v161 = vsub.s32 0, %v160
    %v162 = vrot.slane %v157, %v161
    %v172 = vunpack.c.l.b16 %v149
    %v173 = vunpack.c.l.b16 %v150
    %v174 = vunpack.c.l.b16 %v151
    %v175 = vunpack.c.l.b16 %v152
    %v176 = vunpack.c.l.b16 %v153
    %v177 = vunpack.c.l.b16 %v154
    %v178 = vunpack.c.l.b16 %v155
    %v179 = vunpack.c.l.b16 %v156
    %v180 = vpack.c.b16 %v173, %v172
    %v181 = vpack.c.b16 %v175, %v174
    %v182 = vpack.c.b16 %v177, %v176
    %v183 = vpack.c.b16 %v179, %v178
    %vm188 = vcmask 523264
    %v190 = vsel %vm188, %v148, 0
    %192 = vmatprep.subr.bf16.mxu0 0
    %193 = vmatpush1.bf16.msra.mxu0 0
    %194 = vmatprep.subr.bf16.mxu0 0
    %195 = vmatpush1.bf16.msra.mxu0 0
    %196 = vmatprep.subr.bf16.mxu0 0
    %197 = vmatpush1.bf16.msra.mxu0 0
    %198 = vmatprep.subr.bf16.mxu0 0
    %199 = vmatpush1.bf16.msra.mxu0 0
    %200 = vmatprep.subr.bf16.mxu0 0
    %201 = vmatpush1.bf16.msra.mxu0 %v183
    %202 = vmatprep.subr.bf16.mxu0 0
    %203 = vmatpush1.bf16.msra.mxu0 %v182
    %204 = vmatprep.subr.bf16.mxu0 0
    %205 = vmatpush1.bf16.msra.mxu0 %v181
    %206 = vmatprep.subr.bf16.mxu0 0
    %207 = vmatpush1.bf16.msra.mxu0 %v180
    %208 = vmatprep.subr.bf16.mxu0 0
    %209 = vmatpush2.bf16.msra.mxu0 0
    %210 = vmatprep.subr.bf16.mxu0 0
    %211 = vmatpush2.bf16.msra.mxu0 0
    %212 = vmatprep.subr.bf16.mxu0 0
    %213 = vmatpush2.bf16.msra.mxu0 0
    %214 = vmatprep.subr.bf16.mxu0 0
    %215 = vmatpush2.bf16.msra.mxu0 0
    %216 = vmatprep.subr.bf16.mxu0 0
    %217 = vmatpush2.bf16.msra.mxu0 0
    %218 = vmatprep.subr.bf16.mxu0 0
    %219 = vmatpush2.bf16.msra.mxu0 0
    %220 = vmatprep.subr.bf16.mxu0 0
    %221 = vmatpush2.bf16.msra.mxu0 0
    %222 = vmatprep.subr.bf16.mxu0 0
    %223 = vmatpush2.bf16.msra.mxu0 0
    %224 = vmatprep.mubr.bf16.mxu0 0
    %225 = vmatmul.mubr.bf16.gmra.mxu0 %v190
    %v226 = vpop.f32.mrf.mxu0
    %v227 = vadd.f32 %v162, %v226
    %v228 = vpop.f32.mrf.mxu0
    %v229 = vpop.f32.mrf.mxu0
    %v230 = vpop.f32.mrf.mxu0
    %231 = vdwg.mxu0
    %v232 = vld [vmem:[%s7] sm:$0x1]
    %v233 = vld [vmem:[%s8] sm:$0x1]
    %vm234 = vcmask 254976
    %v235 = vsel %vm234, %v227, 0.0
    %236 = vadd.xlane.f32.xlu0 %v235
    %v237 = vpop.xlane.xlu0 %236
    %v238 = vrcp.pop 32.0
    %v239 = vmul.f32 %v237, %v238
    %v240 = vsub.f32 %v227, %v239
    %v241 = vmul.f32 %v240, %v240
    %v242 = vsel %vm234, %v241, 0.0
    %243 = vadd.xlane.f32.xlu0 %v242
    %v244 = vpop.xlane.xlu0 %243
    %v245 = vmul.f32 %v244, %v238
    %v246 = vadd.f32 %v245, 1e-05
    %v247 = vrsqrt.pop %v246
    %v248 = vmul.f32 %v240, %v247
    %v250 = vlaneseq
    %v251 = vshrl.u32 %v250, 7
    %v252 = vsub.s32 0, %v251
    %v253 = vrot.slane %v232, %v252
    %v255 = vmul.f32 %v248, %v253
    %v257 = vlaneseq
    %v258 = vshrl.u32 %v257, 7
    %v259 = vsub.s32 0, %v258
    %v260 = vrot.slane %v233, %v259
    %v262 = vadd.f32 %v255, %v260
    %v263 = vmul.f32 %v262, 0.5
    %v264 = vmul.f32 %v262, 0.70710677
    %v265 = verf.f32.pop %v264
    %v266 = vadd.f32 %v265, 1.0
    %v267 = vmul.f32 %v263, %v266
    %268 = vst.msk [vmem:[#allocation2] sm:$0x3] %vm234, %v267
  $region49: #{initial_only_tagger_forward.3} parent=0 // pred_fallthru
    _
  %v269 = vld [vmem:[#allocation2] sm:$0x3]
  %v270 = vpack.c.bf16 %v269, %v269
  %v271 = vld [vmem:[%s9] sm:$0xf]
  %v272 = vld [vmem:[%s9 + $0x4] sm:$0xf]
  %v273 = vld [vmem:[%s9 + $0x8] sm:$0xf]
  %v274 = vld [vmem:[%s9 + $0xc] sm:$0xf]
  %v275 = vld [vmem:[%s10] sm:$0x1]
  %v277 = vlaneseq
  %v278 = vshrl.u32 %v277, 7
  %v279 = vsub.s32 0, %v278
  %v280 = vrot.slane %v275, %v279
  %v286 = vunpack.c.l.b16 %v271
  %v287 = vunpack.c.l.b16 %v272
  %v288 = vunpack.c.l.b16 %v273
  %v289 = vunpack.c.l.b16 %v274
  %v290 = vpack.c.b16 %v287, %v286
  %v291 = vpack.c.b16 %v289, %v288
  %vm294 = vcmask 261120
  %v296 = vsel %vm294, %v270, 0
  %298 = vmatprep.subr.bf16.mxu0 0
  %299 = vmatpush1.bf16.msra.mxu0 0
  %300 = vmatprep.subr.bf16.mxu0 0
  %301 = vmatpush1.bf16.msra.mxu0 0
  %302 = vmatprep.subr.bf16.mxu0 0
  %303 = vmatpush1.bf16.msra.mxu0 0
  %304 = vmatprep.subr.bf16.mxu0 0
  %305 = vmatpush1.bf16.msra.mxu0 0
  %306 = vmatprep.subr.bf16.mxu0 0
  %307 = vmatpush1.bf16.msra.mxu0 0
  %308 = vmatprep.subr.bf16.mxu0 0
  %309 = vmatpush1.bf16.msra.mxu0 0
  %310 = vmatprep.subr.bf16.mxu0 0
  %311 = vmatpush1.bf16.msra.mxu0 %v291
  %312 = vmatprep.subr.bf16.mxu0 0
  %313 = vmatpush1.bf16.msra.mxu0 %v290
  %314 = vmatprep.subr.bf16.mxu0 0
  %315 = vmatpush2.bf16.msra.mxu0 0
  %316 = vmatprep.subr.bf16.mxu0 0
  %317 = vmatpush2.bf16.msra.mxu0 0
  %318 = vmatprep.subr.bf16.mxu0 0
  %319 = vmatpush2.bf16.msra.mxu0 0
  %320 = vmatprep.subr.bf16.mxu0 0
  %321 = vmatpush2.bf16.msra.mxu0 0
  %322 = vmatprep.subr.bf16.mxu0 0
  %323 = vmatpush2.bf16.msra.mxu0 0
  %324 = vmatprep.subr.bf16.mxu0 0
  %325 = vmatpush2.bf16.msra.mxu0 0
  %326 = vmatprep.subr.bf16.mxu0 0
  %327 = vmatpush2.bf16.msra.mxu0 0
  %328 = vmatprep.subr.bf16.mxu0 0
  %329 = vmatpush2.bf16.msra.mxu0 0
  %330 = vmatprep.mubr.bf16.mxu0 0
  %331 = vmatmul.mubr.bf16.gmra.mxu0 %v296
  %v332 = vpop.f32.mrf.mxu0
  %v333 = vadd.f32 %v280, %v332
  %v334 = vpop.f32.mrf.mxu0
  %v335 = vpop.f32.mrf.mxu0
  %v336 = vpop.f32.mrf.mxu0
  %337 = vdwg.mxu0
  %v338 = vmax.f32 %v333, -15.0
  %v339 = vmin.f32 %v338, 15.0
  %340 = vst [vmem:[%s11] sm:$0x3] %v339
  // Predicated region
  $region50: #{initial_only_tagger_forward.3} parent=0 // pred_check
    _
  $region51: #{initial_only_tagger_forward.3} parent=0 // pred_check_branch
    %342 = sbr.rel (0) target = $region53
  $region52: #{initial_only_tagger_forward.3} parent=0 // pred_region
    _
  $region53: #{initial_only_tagger_forward.3} parent=0 // pred_fallthru
    _
  // Predicated region
  $region54: #{initial_only_tagger_forward.3} parent=0 // pred_check
    _
  $region55: #{initial_only_tagger_forward.3} parent=0 // pred_check_branch
    %344 = sbr.rel (0) target = $region57
  $region56: #{initial_only_tagger_forward.3} parent=0 // pred_region
    _
  $region57: #{initial_only_tagger_forward.3} parent=0 // pred_fallthru
    _

// kernel: initial_only_tagger_forward.2
$region0: #{initial_only_tagger_forward.2}
  #allocation0 [shape = 'u32[]', space=smem, size = 0x4, offset = 0x4, fixed_abs, tag = 'smem constant byte address 0x4 - core index']
  #allocation1 [shape = 'u32[144,128]{1,0:T(1,128)}', space=vmem, size = 0x12000, scoped, tag = 'internal scratch']
  #allocation2 [shape = 'f32[32,128]{1,0:T(8,128)}', space=vmem, size = 0x4000, scoped, tag = 'scratch operand']
  %s0 = inlined_call_operand.vmem [shape: f32[2,4,256], index: 0, kind: input, shape index: {}]
  %s1 = inlined_call_operand.vmem [shape: f32[32,4], index: 1, kind: input, shape index: {}]
  %s2 = inlined_call_operand.vmem [shape: f32[32,1], index: 2, kind: input, shape index: {}]
  %s3 = inlined_call_operand.vmem [shape: f32[2,32,1], index: 3, kind: output, shape index: {}]
  %s4 = sld [smem:[#allocation0]]
  $region53: #{initial_only_tagger_forward.2} parent=0
    _
  %s6 = ssub.s32 1, %s4
  %s7 = scalar_select 0, %s6, %s4
  loop: start=0, step=1, limit=6
  $region2: #{initial_only_tagger_forward.2} parent=0 // loop_pre_header
    _
  $region3: #{initial_only_tagger_forward.2} parent=0 // loop_header
    %s9 = sphi 0, %s13
    %p10 = scmp.ge.s32.totalorder %s9, 6
    %s16 = sphi 0, %s28
    %s17 = sphi 0, %s24
    %s18 = sphi 0, %s16
    %s19 = sphi 0, %s17
    %s20 = sphi 0, %s18
    %s21 = sphi 0, %s19
    %s33 = sphi 0, %s35
    %s36 = sphi 0, %s33
    %s37 = sphi 0, %s36
    %s53 = sphi 0, %s37
    %s57 = sphi 0, %s57
    %s59 = sphi 0, %s57
    %s60 = sphi 0, %s59
    %s74 = sphi 0, %s60
    %s78 = sphi 0, %s78
    %s80 = sphi 0, %s78
    %s81 = sphi 0, %s80
    %s95 = sphi 0, %s81
    %s101 = sphi 0, %s103
    %s104 = sphi 0, %s101
    %s105 = sphi 0, %s104
    %s121 = sphi 0, %s105
  $region4: #{initial_only_tagger_forward.2} parent=0 // loop_header_branch
    %12 = sbr.rel (%p10) target = $region8
  $region5: #{initial_only_tagger_forward.2} parent=0 // loop_body
    %s14 = ssub.s32 %s9, 1
    %s15 = ssub.s32 %s9, 2
    %s22 = sadd.s32 1, %s17
    %p23 = scmp.ge.s32.totalorder %s22, 2
    %s24 = scalar_select %p23, 0, %s22
    %s25 = sadd.s32 1, %s16
    %s26 = scalar_select %p23, %s25, %s16
    %p27 = scmp.ge.s32.totalorder %s26, 2
    %s28 = scalar_select %p27, 0, %s26
    %s29 = ssub.s32 %s16, %s28
    %s30 = ssub.s32 %s17, %s24
    %s31 = sor.u32 %s29, %s30
    %p32 = scmp.eq.s32.totalorder %s31, 0
    %s34 = sadd.s32 %s33, 1
    %s35 = scalar_select %p32, %s33, %s34
    %p38 = pneg %p32
    %p39 = scmp.eq.s32.totalorder %s9, 3
    %p40 = por %p38, %p39
    %p41 = scmp.ne.s32.totalorder %s33, %s36
    %p42 = scmp.eq.s32.totalorder %s9, 0
    %p43 = por %p41, %p42
    %p44 = scmp.ne.s32.totalorder %s33, %s36
    %p45 = scmp.eq.s32.totalorder %s14, 3
    %p46 = por %p44, %p45
    %p47 = scmp.ne.s32.totalorder %s36, %s37
    %p48 = scmp.eq.s32.totalorder %s14, 0
    %p49 = por %p47, %p48
    %p50 = scmp.ne.s32.totalorder %s36, %s37
    %p51 = scmp.eq.s32.totalorder %s15, 3
    %p52 = por %p50, %p51
    %p54 = scmp.ne.s32.totalorder %s37, %s53
    %p55 = scmp.eq.s32.totalorder %s15, 0
    %p56 = por %p54, %p55
    %s58 = sadd.s32 %s57, 1
    %p61 = scmp.eq.s32.totalorder %s9, 3
    %p62 = scmp.ne.s32.totalorder %s57, %s59
    %p63 = scmp.eq.s32.totalorder %s9, 0
    %p64 = por %p62, %p63
    %p65 = scmp.ne.s32.totalorder %s57, %s59
    %p66 = scmp.eq.s32.totalorder %s14, 3
    %p67 = por %p65, %p66
    %p68 = scmp.ne.s32.totalorder %s59, %s60
    %p69 = scmp.eq.s32.totalorder %s14, 0
    %p70 = por %p68, %p69
    %p71 = scmp.ne.s32.totalorder %s59, %s60
    %p72 = scmp.eq.s32.totalorder %s15, 3
    %p73 = por %p71, %p72
    %p75 = scmp.ne.s32.totalorder %s60, %s74
    %p76 = scmp.eq.s32.totalorder %s15, 0
    %p77 = por %p75, %p76
    %s79 = sadd.s32 %s78, 1
    %p82 = scmp.eq.s32.totalorder %s9, 3
    %p83 = scmp.ne.s32.totalorder %s78, %s80
    %p84 = scmp.eq.s32.totalorder %s9, 0
    %p85 = por %p83, %p84
    %p86 = scmp.ne.s32.totalorder %s78, %s80
    %p87 = scmp.eq.s32.totalorder %s14, 3
    %p88 = por %p86, %p87
    %p89 = scmp.ne.s32.totalorder %s80, %s81
    %p90 = scmp.eq.s32.totalorder %s14, 0
    %p91 = por %p89, %p90
    %p92 = scmp.ne.s32.totalorder %s80, %s81
    %p93 = scmp.eq.s32.totalorder %s15, 3
    %p94 = por %p92, %p93
    %p96 = scmp.ne.s32.totalorder %s81, %s95
    %p97 = scmp.eq.s32.totalorder %s15, 0
    %p98 = por %p96, %p97
    %s99 = ssub.s32 %s16, %s28
    %p100 = scmp.eq.s32.totalorder %s99, 0
    %s102 = sadd.s32 %s101, 1
    %s103 = scalar_select %p100, %s101, %s102
    %p106 = pneg %p100
    %p107 = scmp.eq.s32.totalorder %s9, 3
    %p108 = por %p106, %p107
    %p109 = scmp.ne.s32.totalorder %s101, %s104
    %p110 = scmp.eq.s32.totalorder %s9, 0
    %p111 = por %p109, %p110
    %p112 = scmp.ne.s32.totalorder %s101, %s104
    %p113 = scmp.eq.s32.totalorder %s14, 3
    %p114 = por %p112, %p113
    %p115 = scmp.ne.s32.totalorder %s104, %s105
    %p116 = scmp.eq.s32.totalorder %s14, 0
    %p117 = por %p115, %p116
    %p118 = scmp.ne.s32.totalorder %s104, %s105
    %p119 = scmp.eq.s32.totalorder %s15, 3
    %p120 = por %p118, %p119
    %p122 = scmp.ne.s32.totalorder %s105, %s121
    %p123 = scmp.eq.s32.totalorder %s15, 0
    %p124 = por %p122, %p123
    %p125 = scmp.le.s32.totalorder 1, %s9
    %p126 = scmp.lt.s32.totalorder %s9, 5
    %p127 = pnand %p125, %p126
    %p128 = pneg %p127
    // Predicated region
    $region9: #{initial_only_tagger_forward.2} parent=5 // pred_check
      _
    $region10: #{initial_only_tagger_forward.2} parent=5 // pred_check_branch
      %130 = sbr.rel (%p127) target = $region12
    $region11: #{initial_only_tagger_forward.2} parent=5 // pred_region
      %s131 = ssub.s32 %s9, 1
      // Predicated region
      $region13: #{initial_only_tagger_forward.2} parent=11 // pred_check
        %p132 = pneg %p70
      $region14: #{initial_only_tagger_forward.2} parent=11 // pred_check_branch
        %134 = sbr.rel (%p132) target = $region16
      $region15: #{initial_only_tagger_forward.2} parent=11 // pred_region
        _
      $region16: #{initial_only_tagger_forward.2} parent=11 // pred_fallthru
        _
      // Predicated region
      $region17: #{initial_only_tagger_forward.2} parent=11 // pred_check
        %p135 = pneg %p91
      $region18: #{initial_only_tagger_forward.2} parent=11 // pred_check_branch
        %137 = sbr.rel (%p135) target = $region20
      $region19: #{initial_only_tagger_forward.2} parent=11 // pred_region
        _
      $region20: #{initial_only_tagger_forward.2} parent=11 // pred_fallthru
        _
    $region12: #{initial_only_tagger_forward.2} parent=5 // pred_fallthru
      _
    %p138 = scmp.lt.s32.totalorder %s9, 4
    // Predicated region
    $region21: #{initial_only_tagger_forward.2} parent=5 // pred_check
      %p139 = pneg %p138
    $region22: #{initial_only_tagger_forward.2} parent=5 // pred_check_branch
      %141 = sbr.rel (%p139) target = $region24
    $region23: #{initial_only_tagger_forward.2} parent=5 // pred_region
      // Predicated region
      $region25: #{initial_only_tagger_forward.2} parent=23 // pred_check
        %p142 = pneg %p43
      $region26: #{initial_only_tagger_forward.2} parent=23 // pred_check_branch
        %144 = sbr.rel (%p142) target = $region28
      $region27: #{initial_only_tagger_forward.2} parent=23 // pred_region
        %p145 = scmp.lt.s32.totalorder %s16, 1
        %s146 = scalar_select %p145, %s16, 1
        %p147 = scmp.lt.s32.totalorder %s17, 1
        %s148 = scalar_select %p147, %s17, 1
        %s149 = smul.addr %s146, 2
        %s150 = sadd.s32 %s148, %s149
        %s151 = smul.addr %s150, 4
        %s152 = scalar_lea.vmem %s0, %s151
      $region28: #{initial_only_tagger_forward.2} parent=23 // pred_fallthru
        _
    $region24: #{initial_only_tagger_forward.2} parent=5 // pred_fallthru
      _
    %p153 = scmp.le.s32.totalorder 1, %s9
    %p154 = scmp.lt.s32.totalorder %s9, 5
    %p155 = pnand %p153, %p154
    %p156 = pneg %p155
    // Predicated region
    $region29: #{initial_only_tagger_forward.2} parent=5 // pred_check
      _
    $region30: #{initial_only_tagger_forward.2} parent=5 // pred_check_branch
      %158 = sbr.rel (%p155) target = $region32
    $region31: #{initial_only_tagger_forward.2} parent=5 // pred_region
      %s159 = ssub.s32 %s9, 1
      %p160 = scmp.lt.s32.totalorder %s18, 1
      %s161 = scalar_select %p160, %s18, 1
      %p162 = scmp.lt.s32.totalorder %s19, 1
      %s163 = scalar_select %p162, %s19, 1
      %s164 = smul.addr %s161, 2
      %s165 = sadd.s32 %s163, %s164
      %s166 = smul.addr %s165, 4
      %s167 = scalar_lea.vmem %s0, %s166
      %p168 = pneg %p49
      %p169 = pneg %p46
      %p170 = pneg %p70
      %p171 = pneg %p67
      %p172 = pneg %p91
      %p173 = pneg %p88
      %p174 = pneg %p117
      %p175 = pneg %p114
      %p176 = scmp.lt.s32.totalorder %s18, 1
      %s177 = scalar_select %p176, %s18, 1
      %s178 = smul.addr %s177, 4
      %s179 = smul.addr %s178, 8
      %s180 = scalar_lea.vmem %s3, %s179
      %p181 = scmp.lt.s32.totalorder %s18, 1
      %s182 = scalar_select %p181, %s18, 1
      %p183 = scmp.lt.s32.totalorder %s19, 1
      %s184 = scalar_select %p183, %s19, 1
      %s185 = smul.addr %s182, 2
      %s186 = sadd.s32 %s184, %s185
      %s187 = smul.addr %s186, 4
      %s188 = scalar_lea.vmem %s0, %s187
      %p189 = scmp.lt.s32.totalorder %s18, 1
      %s190 = scalar_select %p189, %s18, 1
      %s191 = smul.addr %s190, 4
      %s192 = smul.addr %s191, 8
      %s193 = scalar_lea.vmem %s3, %s192
      %p194 = scmp.eq.s32.totalorder %s19, 0
      // Predicated region
      $region33: #{initial_only_tagger_forward.2} parent=31 // pred_check
        %p195 = pneg %p194
      $region34: #{initial_only_tagger_forward.2} parent=31 // pred_check_branch
        %197 = sbr.rel (%p195) target = $region36
      $region35: #{initial_only_tagger_forward.2} parent=31 // pred_region
        %198 = vst [vmem:[#allocation2] sm:$0xff] 0.0
        %199 = vst [vmem:[#allocation2 + $0x8] sm:$0xff] 0.0
        %200 = vst [vmem:[#allocation2 + $0x10] sm:$0xff] 0.0
        %201 = vst [vmem:[#allocation2 + $0x18] sm:$0xff] 0.0
      $region36: #{initial_only_tagger_forward.2} parent=31 // pred_fallthru
        _
      %v202 = vld [vmem:[%s188] sm:$0xf]
      %v203 = vld [vmem:[%s1] sm:$0xff]
      %v204 = vld [vmem:[%s1 + $0x8] sm:$0xff]
      %v205 = vld [vmem:[%s1 + $0x10] sm:$0xff]
      %v206 = vld [vmem:[%s1 + $0x18] sm:$0xff]
      %v207 = vld [vmem:[%s2] sm:$0xff]
      %v208 = vld [vmem:[%s2 + $0x8] sm:$0xff]
      %v209 = vld [vmem:[%s2 + $0x10] sm:$0xff]
      %v210 = vld [vmem:[%s2 + $0x18] sm:$0xff]
      %212 = vset.pattern.permute.xlu0 0
      %213 = vperm.xlu0 %212, %v203
      %v214 = vpop.permute.xlu0 %213
      %217 = vset.pattern.permute.xlu0 0
      %218 = vperm.xlu0 %217, %v204
      %v219 = vpop.permute.xlu0 %218
      %222 = vset.pattern.permute.xlu0 0
      %223 = vperm.xlu0 %222, %v205
      %v224 = vpop.permute.xlu0 %223
      %227 = vset.pattern.permute.xlu0 0
      %228 = vperm.xlu0 %227, %v206
      %v229 = vpop.permute.xlu0 %228
      %v231 = vlaneseq
      %v232 = vshrl.u32 %v231, 7
      %v233 = vsub.s32 0, %v232
      %v234 = vrot.slane %v202, %v233
      %v235 = vmul.f32 %v214, %v234
      %v236 = vmul.f32 %v219, %v234
      %v237 = vmul.f32 %v224, %v234
      %v238 = vmul.f32 %v229, %v234
      %239 = vset.pattern.permute.xlu0 1
      %240 = vperm.xlu0 %239, %v203
      %v241 = vpop.permute.xlu0 %240
      %243 = vset.pattern.permute.xlu0 1
      %244 = vperm.xlu0 %243, %v204
      %v245 = vpop.permute.xlu0 %244
      %247 = vset.pattern.permute.xlu0 1
      %248 = vperm.xlu0 %247, %v205
      %v249 = vpop.permute.xlu0 %248
      %251 = vset.pattern.permute.xlu0 1
      %252 = vperm.xlu0 %251, %v206
      %v253 = vpop.permute.xlu0 %252
      %v255 = vlaneseq
      %v256 = vshrl.u32 %v255, 7
      %v257 = vsub.s32 1, %v256
      %v258 = vrot.slane %v202, %v257
      %v259 = vmul.f32 %v241, %v258
      %v260 = vmul.f32 %v245, %v258
      %v261 = vmul.f32 %v249, %v258
      %v262 = vmul.f32 %v253, %v258
      %v263 = vadd.f32 %v235, %v259
      %v264 = vadd.f32 %v236, %v260
      %v265 = vadd.f32 %v237, %v261
      %v266 = vadd.f32 %v238, %v262
      %267 = vset.pattern.permute.xlu0 2
      %268 = vperm.xlu0 %267, %v203
      %v269 = vpop.permute.xlu0 %268
      %271 = vset.pattern.permute.xlu0 2
      %272 = vperm.xlu0 %271, %v204
      %v273 = vpop.permute.xlu0 %272
      %275 = vset.pattern.permute.xlu0 2
      %276 = vperm.xlu0 %275, %v205
      %v277 = vpop.permute.xlu0 %276
      %279 = vset.pattern.permute.xlu0 2
      %280 = vperm.xlu0 %279, %v206
      %v281 = vpop.permute.xlu0 %280
      %v283 = vlaneseq
      %v284 = vshrl.u32 %v283, 7
      %v285 = vsub.s32 2, %v284
      %v286 = vrot.slane %v202, %v285
      %v287 = vmul.f32 %v269, %v286
      %v288 = vmul.f32 %v273, %v286
      %v289 = vmul.f32 %v277, %v286
      %v290 = vmul.f32 %v281, %v286
      %v291 = vadd.f32 %v263, %v287
      %v292 = vadd.f32 %v264, %v288
      %v293 = vadd.f32 %v265, %v289
      %v294 = vadd.f32 %v266, %v290
      %295 = vset.pattern.permute.xlu0 3
      %296 = vperm.xlu0 %295, %v203
      %v297 = vpop.permute.xlu0 %296
      %299 = vset.pattern.permute.xlu0 3
      %300 = vperm.xlu0 %299, %v204
      %v301 = vpop.permute.xlu0 %300
      %303 = vset.pattern.permute.xlu0 3
      %304 = vperm.xlu0 %303, %v205
      %v305 = vpop.permute.xlu0 %304
      %307 = vset.pattern.permute.xlu0 3
      %308 = vperm.xlu0 %307, %v206
      %v309 = vpop.permute.xlu0 %308
      %v311 = vlaneseq
      %v312 = vshrl.u32 %v311, 7
      %v313 = vsub.s32 3, %v312
      %v314 = vrot.slane %v202, %v313
      %v315 = vmul.f32 %v297, %v314
      %v316 = vmul.f32 %v301, %v314
      %v317 = vmul.f32 %v305, %v314
      %v318 = vmul.f32 %v309, %v314
      %v319 = vadd.f32 %v291, %v315
      %v320 = vadd.f32 %v292, %v316
      %v321 = vadd.f32 %v293, %v317
      %v322 = vadd.f32 %v294, %v318
      %324 = vset.pattern.permute.xlu0 0
      %325 = vperm.xlu0 %324, %v207
      %v326 = vpop.permute.xlu0 %325
      %329 = vset.pattern.permute.xlu0 0
      %330 = vperm.xlu0 %329, %v208
      %v331 = vpop.permute.xlu0 %330
      %334 = vset.pattern.permute.xlu0 0
      %335 = vperm.xlu0 %334, %v209
      %v336 = vpop.permute.xlu0 %335
      %339 = vset.pattern.permute.xlu0 0
      %340 = vperm.xlu0 %339, %v210
      %v341 = vpop.permute.xlu0 %340
      %v343 = vadd.f32 %v319, %v326
      %v344 = vadd.f32 %v320, %v331
      %v345 = vadd.f32 %v321, %v336
      %v346 = vadd.f32 %v322, %v341
      %v347 = vxor.u32 %v343, 2147483648
      %v348 = vxor.u32 %v344, 2147483648
      %v349 = vxor.u32 %v345, 2147483648
      %v350 = vxor.u32 %v346, 2147483648
      %v351 = vmul.f32 %v347, 1.442695
      %v352 = vpow.pop %v351
      %v353 = vmul.f32 %v348, 1.442695
      %v354 = vpow.pop %v353
      %v355 = vmul.f32 %v349, 1.442695
      %v356 = vpow.pop %v355
      %v357 = vmul.f32 %v350, 1.442695
      %v358 = vpow.pop %v357
      %v359 = vadd.f32 %v352, 1.0
      %v360 = vadd.f32 %v354, 1.0
      %v361 = vadd.f32 %v356, 1.0
      %v362 = vadd.f32 %v358, 1.0
      %v363 = vrcp.pop %v359
      %v364 = vmul.f32 1.0, %v363
      %v365 = vrcp.pop %v360
      %v366 = vmul.f32 1.0, %v365
      %v367 = vrcp.pop %v361
      %v368 = vmul.f32 1.0, %v367
      %v369 = vrcp.pop %v362
      %v370 = vmul.f32 1.0, %v369
      %v371 = vmul.f32 %v343, %v364
      %v372 = vmul.f32 %v344, %v366
      %v373 = vmul.f32 %v345, %v368
      %v374 = vmul.f32 %v346, %v370
      %v375 = vld [vmem:[#allocation2] sm:$0xff]
      %v376 = vld [vmem:[#allocation2 + $0x8] sm:$0xff]
      %v377 = vld [vmem:[#allocation2 + $0x10] sm:$0xff]
      %v378 = vld [vmem:[#allocation2 + $0x18] sm:$0xff]
      %v379 = vadd.f32 %v375, %v371
      %v380 = vadd.f32 %v376, %v372
      %v381 = vadd.f32 %v377, %v373
      %v382 = vadd.f32 %v378, %v374
      %383 = vst [vmem:[#allocation2] sm:$0xff] %v379
      %384 = vst [vmem:[#allocation2 + $0x8] sm:$0xff] %v380
      %385 = vst [vmem:[#allocation2 + $0x10] sm:$0xff] %v381
      %386 = vst [vmem:[#allocation2 + $0x18] sm:$0xff] %v382
      %p387 = scmp.eq.s32.totalorder %s19, 1
      // Predicated region
      $region37: #{initial_only_tagger_forward.2} parent=31 // pred_check
        %p388 = pneg %p387
      $region38: #{initial_only_tagger_forward.2} parent=31 // pred_check_branch
        %390 = sbr.rel (%p388) target = $region40
      $region39: #{initial_only_tagger_forward.2} parent=31 // pred_region
        %v391 = vld [vmem:[#allocation2] sm:$0xff]
        %v392 = vld [vmem:[#allocation2 + $0x8] sm:$0xff]
        %v393 = vld [vmem:[#allocation2 + $0x10] sm:$0xff]
        %v394 = vld [vmem:[#allocation2 + $0x18] sm:$0xff]
        %395 = vadd.xlane.f32.xlu0 %v391
        %v396 = vpop.xlane.xlu0 %395
        %397 = vadd.xlane.f32.xlu0 %v392
        %v398 = vpop.xlane.xlu0 %397
        %399 = vadd.xlane.f32.xlu0 %v393
        %v400 = vpop.xlane.xlu0 %399
        %401 = vadd.xlane.f32.xlu0 %v394
        %v402 = vpop.xlane.xlu0 %401
        %v403 = vmul.f32 %v396, 0.00390625
        %v404 = vmul.f32 %v398, 0.00390625
        %v405 = vmul.f32 %v400, 0.00390625
        %v406 = vmul.f32 %v402, 0.00390625
        %vm407 = vcmask 7168
        %408 = vst.msk [vmem:[%s193] sm:$0xff] %vm407, %v403
        %409 = vst.msk [vmem:[%s193 + $0x8] sm:$0xff] %vm407, %v404
        %410 = vst.msk [vmem:[%s193 + $0x10] sm:$0xff] %vm407, %v405
        %411 = vst.msk [vmem:[%s193 + $0x18] sm:$0xff] %vm407, %v406
      $region40: #{initial_only_tagger_forward.2} parent=31 // pred_fallthru
        _
      %p412 = scmp.lt.s32.totalorder %s18, 1
      %s413 = scalar_select %p412, %s18, 1
      %s414 = smul.addr %s413, 4
      %s415 = smul.addr %s414, 8
      %s416 = scalar_lea.vmem %s3, %s415
      // Predicated region
      $region41: #{initial_only_tagger_forward.2} parent=31 // pred_check
        %p417 = pneg %p114
      $region42: #{initial_only_tagger_forward.2} parent=31 // pred_check_branch
        %419 = sbr.rel (%p417) target = $region44
      $region43: #{initial_only_tagger_forward.2} parent=31 // pred_region
        _
      $region44: #{initial_only_tagger_forward.2} parent=31 // pred_fallthru
        _
    $region32: #{initial_only_tagger_forward.2} parent=5 // pred_fallthru
      _
    %p420 = scmp.le.s32.totalorder 2, %s9
    // Predicated region
    $region45: #{initial_only_tagger_forward.2} parent=5 // pred_check
      %p421 = pneg %p420
    $region46: #{initial_only_tagger_forward.2} parent=5 // pred_check_branch
      %423 = sbr.rel (%p421) target = $region48
    $region47: #{initial_only_tagger_forward.2} parent=5 // pred_region
      %s424 = ssub.s32 %s9, 2
      // Predicated region
      $region49: #{initial_only_tagger_forward.2} parent=47 // pred_check
        %p425 = pneg %p120
      $region50: #{initial_only_tagger_forward.2} parent=47 // pred_check_branch
        %427 = sbr.rel (%p425) target = $region52
      $region51: #{initial_only_tagger_forward.2} parent=47 // pred_region
        %p428 = scmp.lt.s32.totalorder %s20, 1
        %s429 = scalar_select %p428, %s20, 1
        %s430 = smul.addr %s429, 4
        %s431 = smul.addr %s430, 8
        %s432 = scalar_lea.vmem %s3, %s431
      $region52: #{initial_only_tagger_forward.2} parent=47 // pred_fallthru
        _
    $region48: #{initial_only_tagger_forward.2} parent=5 // pred_fallthru
      _
  $region6: #{initial_only_tagger_forward.2} parent=0 // loop_footer
    %s13 = sadd.s32 1, %s9
  $region7: #{initial_only_tagger_forward.2} parent=0 // loop_footer_branch
    %8 = sbr.rel target = $region3
  $region8: #{initial_only_tagger_forward.2} parent=0 // loop_exit
    _

</llo_original>
